<compile_context>
chip_gen: v7x
topology: tpu7x:2x2x1
jax: 0.10.0
libtpu: 0.0.40
codegen_flags: <defaults>
</compile_context>

<pallas_src>
import math

import jax
import jax.numpy as jnp
from jax.experimental import pallas as pl
from jax.experimental.pallas import tpu as pltpu

_LANE = 128
_FAST_PATH_MAX_ELEMS = 256 * 1024  # below this, fused XLA beats a kernel launch


def _cdiv(a: int, b: int) -> int:
    return -(-a // b)


def _tile_budget_bytes() -> int:
    """Per-tile VMEM budget: ~4 MiB on v7x, ~2 MiB on v5e/v6e (and unknowns)."""
    try:
        kind = jax.devices()[0].device_kind.lower()
    except Exception:  # pragma: no cover - defensive
        kind = ""
    return (4 << 20) if "v7" in kind else (2 << 20)


def _choose_tiles(B: int, n: int, itemsize: int, budget_bytes: int):
    """Pick (tile_b, tile_n) for a (B, n) flattened activation.

    tile_b is either == B or a multiple of the dtype sublane pack (legal block
    shape); tile_n is either == n or a multiple of 128 (lane-dense stores).
    tile_b * tile_n * itemsize <= budget_bytes.
    """
    budget = max(budget_bytes // itemsize, _LANE)          # elements per tile
    sub = {4: 8, 2: 16, 1: 32}.get(itemsize, 8)            # sublane packing

    # Samples per block: batch several small samples to amortize step overhead.
    want_b = max(budget // max(n, 1), 1)
    if B <= sub or want_b <= sub:
        tile_b = B if B <= sub else sub
    else:
        tile_b = min((want_b // sub) * sub, (B // sub) * sub)

    # Lane dim: whole per-sample row if it fits, else a multiple of 128
    # (ragged last block -> masked tail stores, no whole-tensor pad).
    per_b = max(budget // tile_b, _LANE)
    tile_n = n if n <= per_b else (per_b // _LANE) * _LANE
    return tile_b, tile_n


def _drop_path_kernel(m_ref, x_ref, o_ref):
    # m_ref : (TILE_B, 1) f32 per-sample scale (0.0 or 1/keep_prob)
    # x_ref : (TILE_B, TILE_N) activation tile
    # o_ref : (TILE_B, TILE_N) output tile
    m = m_ref[...].astype(x_ref.dtype)       # cast once; multiply in x.dtype
    o_ref[...] = x_ref[...] * m              # (TILE_B,1) broadcast over lanes


def drop_path_pallas(x, mask):
    """x: (B, ...); mask: (B,) per-sample scale (0.0 or 1/keep_prob)."""
    B = x.shape[0]
    n = math.prod(x.shape[1:]) if x.ndim > 1 else 1
    mask = mask.astype(jnp.float32)

    if B * n <= _FAST_PATH_MAX_ELEMS:
        # Small/medium tensors: a fused XLA broadcast-multiply matches HBM
        # roofline with zero launch/pad cost.
        bshape = (B,) + (1,) * (x.ndim - 1)
        return (x * mask.reshape(bshape).astype(x.dtype)).astype(x.dtype)

    itemsize = jnp.dtype(x.dtype).itemsize
    tile_b, tile_n = _choose_tiles(B, n, itemsize, _tile_budget_bytes())
    grid = (_cdiv(B, tile_b), _cdiv(n, tile_n))

    x2 = x.reshape(B, n)        # trailing-dim collapse only; no pad, no slice
    m2 = mask.reshape(B, 1)

    out2 = pl.pallas_call(
        _drop_path_kernel,
        out_shape=jax.ShapeDtypeStruct((B, n), x.dtype),
        grid=grid,
        in_specs=[
            pl.BlockSpec((tile_b, 1), lambda i, j: (i, 0)),
            pl.BlockSpec((tile_b, tile_n), lambda i, j: (i, j)),
        ],
        out_specs=pl.BlockSpec((tile_b, tile_n), lambda i, j: (i, j)),
        compiler_params=pltpu.CompilerParams(
            dimension_semantics=("parallel", "parallel")),
        cost_estimate=pl.CostEstimate(
            flops=B * n,
            transcendentals=0,
            bytes_accessed=2 * B * n * itemsize + B * 4),
    )(m2, x2)

    return out2.reshape(x.shape)


def drop_path(x, key, drop_prob: float = 0.0, training: bool = False,
              scale_by_keep: bool = True):
    """Functional equivalent of the PyTorch drop_path()."""
    if drop_prob == 0.0 or not training:
        return x
    keep_prob = 1.0 - drop_prob
    # Per-sample Bernoulli draw (shape (B,)); scale computed in f32, applied
    # in x.dtype inside the kernel.
    keep = jax.random.bernoulli(key, p=keep_prob,
                                shape=(x.shape[0],)).astype(jnp.float32)
    if keep_prob > 0.0 and scale_by_keep:
        keep = keep / jnp.float32(keep_prob)
    return drop_path_pallas(x, keep)


class DropPath:
    """Mirror of the nn.Module interface (stateless; randomness via explicit key)."""

    def __init__(self, drop_prob=None, scale_by_keep=True):
        self.drop_prob = drop_prob if drop_prob is not None else 0.0
        self.scale_by_keep = scale_by_keep
        self.training = True

    def __call__(self, x, key):
        return drop_path(x, key, self.drop_prob, self.training, self.scale_by_keep)


if __name__ == "__main__":
    key = jax.random.PRNGKey(0)
    k_mask, k1, k2, k3, k4 = jax.random.split(key, 5)

    module = DropPath(drop_prob=0.25, scale_by_keep=True)
    module.training = True
    keep_prob = 1.0 - module.drop_prob

    def ref_drop_path(x, key_):
        keep = jax.random.bernoulli(key_, p=keep_prob,
                                    shape=(x.shape[0],)).astype(jnp.float32)
        keep = keep / jnp.float32(keep_prob)
        bshape = (x.shape[0],) + (1,) * (x.ndim - 1)
        return (x * keep.reshape(bshape).astype(x.dtype)).astype(x.dtype)

    # 1) Swin stage-1 style activation (n multiple of 128) -> kernel path.
    x1 = jax.random.normal(k1, (4, 3136, 96), dtype=jnp.float32)
    o1 = jax.block_until_ready(module(x1, k_mask))
    assert o1.shape == x1.shape and o1.dtype == x1.dtype
    assert jnp.allclose(o1, ref_drop_path(x1, k_mask), atol=1e-6, rtol=1e-6)

    # 2) Ragged lane tiles: n = 625*960 = 600000 (not a multiple of 128 and
    #    larger than one lane tile) -> masked boundary block, no pad/slice.
    x2 = jax.random.normal(k2, (2, 625, 960), dtype=jnp.float32)
    o2 = jax.block_until_ready(module(x2, k_mask))
    assert jnp.allclose(o2, ref_drop_path(x2, k_mask), atol=1e-6, rtol=1e-6)

    # 3) bf16 path (in-dtype multiply inside the kernel).
    x3 = jax.random.normal(k3, (8, 197, 768), dtype=jnp.bfloat16)
    o3 = jax.block_until_ready(module(x3, k_mask))
    r3 = ref_drop_path(x3, k_mask)
    assert o3.dtype == jnp.bfloat16
    assert jnp.allclose(o3.astype(jnp.float32), r3.astype(jnp.float32),
                        atol=1e-2, rtol=1e-2)

    # 4) Small tensor -> fused-XLA fast path.
    x4 = jax.random.normal(k4, (2, 64, 96), dtype=jnp.float32)
    o4 = jax.block_until_ready(module(x4, k_mask))
    assert jnp.allclose(o4, ref_drop_path(x4, k_mask), atol=1e-6, rtol=1e-6)

    # 5) Eval / drop_prob=0 -> exact identity (matches PyTorch).
    module.training = False
    o5 = jax.block_until_ready(module(x4, k_mask))
    assert jnp.array_equal(o5, x4)

    print("KERNEL_OK")
</pallas_src>

<mosaic_0001>
module attributes {stable_mosaic.version = 11 : i64} {
  func.func @_drop_path_kernel(%arg0: i32, %arg1: i32, %arg2: memref<4x1xf32, #tpu.memory_space<vmem>>, %arg3: memref<4x131072xf32, #tpu.memory_space<vmem>>, %arg4: memref<4x131072xf32, #tpu.memory_space<vmem>>) attributes {dimension_semantics = [#tpu.dimension_semantics<parallel>, #tpu.dimension_semantics<parallel>], iteration_bounds = array<i64: 1, 3>, scalar_prefetch = 0 : i64, scratch_operands = 0 : i64, tpu.core_type = #tpu.core_type<tc>, window_params = [{transform_indices = @transform_0, window_bounds = array<i64: 4, 1>}, {transform_indices = @transform_1, window_bounds = array<i64: 4, 131072>}, {transform_indices = @transform_2, window_bounds = array<i64: 4, 131072>}]} {
    %c0 = arith.constant 0 : index
    %c0_0 = arith.constant 0 : index
    %0 = vector.load %arg2[%c0, %c0_0] : memref<4x1xf32, #tpu.memory_space<vmem>>, vector<4x1xf32>
    %c0_1 = arith.constant 0 : index
    %c0_2 = arith.constant 0 : index
    %1 = vector.load %arg3[%c0_1, %c0_2] : memref<4x131072xf32, #tpu.memory_space<vmem>>, vector<4x131072xf32>
    %2 = vector.broadcast %0 : vector<4x1xf32> to vector<4x131072xf32>
    %3 = arith.mulf %1, %2 : vector<4x131072xf32>
    %c0_3 = arith.constant 0 : index
    %c0_4 = arith.constant 0 : index
    %4 = vector.load %arg4[%c0_3, %c0_4] : memref<4x131072xf32, #tpu.memory_space<vmem>>, vector<4x131072xf32>
    tpu.vector_store %arg4[%c0_3, %c0_4], %3 {strides = array<i32>} : memref<4x131072xf32, #tpu.memory_space<vmem>>, vector<4x131072xf32>,
    return
  }
  func.func @transform_0(%arg0: i32, %arg1: i32) -> (i32, i32) {
    %c0_i32 = arith.constant 0 : i32
    %c0_i32_0 = arith.constant 0 : i32
    return %arg0, %c0_i32 : i32, i32
  }
  func.func @transform_1(%arg0: i32, %arg1: i32) -> (i32, i32) {
    %c0_i32 = arith.constant 0 : i32
    return %arg0, %arg1 : i32, i32
  }
  func.func @transform_2(%arg0: i32, %arg1: i32) -> (i32, i32) {
    %c0_i32 = arith.constant 0 : i32
    return %arg0, %arg1 : i32, i32
  }
}

</mosaic_0001>

<llo_original>
// kernel: tpu_custom_call.1
$region0: #{tpu_custom_call.1}
  #allocation0 [shape = 'u32[]', space=smem, size = 0x4, offset = 0x4, fixed_abs, tag = 'smem constant byte address 0x4 - core index']
  #allocation1 [shape = 'u32[144,128]{1,0:T(1,128)}', space=vmem, size = 0x12000, scoped, tag = 'internal scratch']
  %s0 = inlined_call_operand.vmem [shape: f32[4,1], index: 0, kind: input, shape index: {}]
  %s1 = inlined_call_operand.hbm [shape: f32[4,301056], index: 1, kind: input, shape index: {}]
  %s2 = inlined_call_operand.hbm [shape: f32[4,301056], index: 2, kind: output, shape index: {}]
  %s3 = sld [smem:[#allocation0]]
  $region45: #{tpu_custom_call.1} parent=0
    _
  %s5 = ssub.s32 1, %s3
  %s6 = scalar_select 0, %s5, %s3
  $region1: #{tpu_custom_call.1} parent=0
    #allocation2 [shape = 'u8[4194304]{0}', space=vmem, size = 0x400000, scoped, tag = 'input window, operand 1']
    #allocation3 [shape = 's32[2]{0}', space=sflag, size = 0x8, scoped, tag = 'scoped memory for tpu_custom_call.1']
    #allocation4 [shape = 's32[2]{0}', space=sflag, size = 0x8, scoped, tag = 'scoped memory for tpu_custom_call.1']
    #allocation5 [shape = 'u8[4194304]{0}', space=vmem, size = 0x400000, scoped, tag = 'output window, operand 0']
    %7 = vsyncpa [#allocation3], 0
    %s8 = scalar_lea.sflag [#allocation3], 1
    %9 = vsyncpa %s8, 0
    %10 = vsyncpa [#allocation4], 0
    %s11 = scalar_lea.sflag [#allocation4], 1
    %12 = vsyncpa %s11, 0
    loop: start=0, step=1, limit=5
    $region2: #{tpu_custom_call.1} parent=1 // loop_pre_header
      _
    $region3: #{tpu_custom_call.1} parent=1 // loop_header
      %s14 = sphi 0, %s18
      %p15 = scmp.ge.s32.totalorder %s14, 5
      %s21 = sphi 0, %s33
      %s22 = sphi 0, %s29
      %s23 = sphi 0, %s21
      %s24 = sphi 0, %s22
      %s25 = sphi 0, %s23
      %s26 = sphi 0, %s24
      %s36 = sphi 0, %s38
      %s39 = sphi 0, %s36
      %s40 = sphi 0, %s39
      %s56 = sphi 0, %s40
      %s64 = sphi 0, %s66
      %s67 = sphi 0, %s64
      %s68 = sphi 0, %s67
      %s84 = sphi 0, %s68
      %s92 = sphi 0, %s94
      %s95 = sphi 0, %s92
      %s96 = sphi 0, %s95
      %s112 = sphi 0, %s96
    $region4: #{tpu_custom_call.1} parent=1 // loop_header_branch
      %17 = sbr.rel (%p15) target = $region8
    $region5: #{tpu_custom_call.1} parent=1 // loop_body
      %s19 = ssub.s32 %s14, 1
      %s20 = ssub.s32 %s14, 2
      %s27 = sadd.s32 1, %s22
      %p28 = scmp.ge.s32.totalorder %s27, 3
      %s29 = scalar_select %p28, 0, %s27
      %s30 = sadd.s32 1, %s21
      %s31 = scalar_select %p28, %s30, %s21
      %p32 = scmp.ge.s32.totalorder %s31, 1
      %s33 = scalar_select %p32, 0, %s31
      %s34 = ssub.s32 %s21, %s33
      %p35 = scmp.eq.s32.totalorder %s34, 0
      %s37 = sadd.s32 %s36, 1
      %s38 = scalar_select %p35, %s36, %s37
      %p41 = pneg %p35
      %p42 = scmp.eq.s32.totalorder %s14, 2
      %p43 = por %p41, %p42
      %p44 = scmp.ne.s32.totalorder %s36, %s39
      %p45 = scmp.eq.s32.totalorder %s14, 0
      %p46 = por %p44, %p45
      %p47 = scmp.ne.s32.totalorder %s36, %s39
      %p48 = scmp.eq.s32.totalorder %s19, 2
      %p49 = por %p47, %p48
      %p50 = scmp.ne.s32.totalorder %s39, %s40
      %p51 = scmp.eq.s32.totalorder %s19, 0
      %p52 = por %p50, %p51
      %p53 = scmp.ne.s32.totalorder %s39, %s40
      %p54 = scmp.eq.s32.totalorder %s20, 2
      %p55 = por %p53, %p54
      %p57 = scmp.ne.s32.totalorder %s40, %s56
      %p58 = scmp.eq.s32.totalorder %s20, 0
      %p59 = por %p57, %p58
      %s60 = ssub.s32 %s21, %s33
      %s61 = ssub.s32 %s22, %s29
      %s62 = sor.u32 %s60, %s61
      %p63 = scmp.eq.s32.totalorder %s62, 0
      %s65 = sadd.s32 %s64, 1
      %s66 = scalar_select %p63, %s64, %s65
      %p69 = pneg %p63
      %p70 = scmp.eq.s32.totalorder %s14, 2
      %p71 = por %p69, %p70
      %p72 = scmp.ne.s32.totalorder %s64, %s67
      %p73 = scmp.eq.s32.totalorder %s14, 0
      %p74 = por %p72, %p73
      %p75 = scmp.ne.s32.totalorder %s64, %s67
      %p76 = scmp.eq.s32.totalorder %s19, 2
      %p77 = por %p75, %p76
      %p78 = scmp.ne.s32.totalorder %s67, %s68
      %p79 = scmp.eq.s32.totalorder %s19, 0
      %p80 = por %p78, %p79
      %p81 = scmp.ne.s32.totalorder %s67, %s68
      %p82 = scmp.eq.s32.totalorder %s20, 2
      %p83 = por %p81, %p82
      %p85 = scmp.ne.s32.totalorder %s68, %s84
      %p86 = scmp.eq.s32.totalorder %s20, 0
      %p87 = por %p85, %p86
      %s88 = ssub.s32 %s21, %s33
      %s89 = ssub.s32 %s22, %s29
      %s90 = sor.u32 %s88, %s89
      %p91 = scmp.eq.s32.totalorder %s90, 0
      %s93 = sadd.s32 %s92, 1
      %s94 = scalar_select %p91, %s92, %s93
      %p97 = pneg %p91
      %p98 = scmp.eq.s32.totalorder %s14, 2
      %p99 = por %p97, %p98
      %p100 = scmp.ne.s32.totalorder %s92, %s95
      %p101 = scmp.eq.s32.totalorder %s14, 0
      %p102 = por %p100, %p101
      %p103 = scmp.ne.s32.totalorder %s92, %s95
      %p104 = scmp.eq.s32.totalorder %s19, 2
      %p105 = por %p103, %p104
      %p106 = scmp.ne.s32.totalorder %s95, %s96
      %p107 = scmp.eq.s32.totalorder %s19, 0
      %p108 = por %p106, %p107
      %p109 = scmp.ne.s32.totalorder %s95, %s96
      %p110 = scmp.eq.s32.totalorder %s20, 2
      %p111 = por %p109, %p110
      %p113 = scmp.ne.s32.totalorder %s96, %s112
      %p114 = scmp.eq.s32.totalorder %s20, 0
      %p115 = por %p113, %p114
      %p116 = scmp.le.s32.totalorder 1, %s14
      %p117 = scmp.lt.s32.totalorder %s14, 4
      %p118 = pnand %p116, %p117
      %p119 = pneg %p118
      // Predicated region
      $region9: #{tpu_custom_call.1} parent=5 // pred_check
        _
      $region10: #{tpu_custom_call.1} parent=5 // pred_check_branch
        %121 = sbr.rel (%p118) target = $region12
      $region11: #{tpu_custom_call.1} parent=5 // pred_region
        %s122 = ssub.s32 %s14, 1
        // Predicated region
        $region13: #{tpu_custom_call.1} parent=11 // pred_check
          %p123 = pneg %p52
        $region14: #{tpu_custom_call.1} parent=11 // pred_check_branch
          %125 = sbr.rel (%p123) target = $region16
        $region15: #{tpu_custom_call.1} parent=11 // pred_region
          %p126 = scmp.lt.s32.totalorder %s23, 0
          %s127 = scalar_select %p126, %s23, 0
          %s128 = smul.addr %s127, 4
          %s129 = scalar_lea.vmem %s0, %s128
        $region16: #{tpu_custom_call.1} parent=11 // pred_fallthru
          _
      $region12: #{tpu_custom_call.1} parent=5 // pred_fallthru
        _
      %p130 = scmp.lt.s32.totalorder %s14, 3
      // Predicated region
      $region17: #{tpu_custom_call.1} parent=5 // pred_check
        %p131 = pneg %p130
      $region18: #{tpu_custom_call.1} parent=5 // pred_check_branch
        %133 = sbr.rel (%p131) target = $region20
      $region19: #{tpu_custom_call.1} parent=5 // pred_region
        // Predicated region
        $region21: #{tpu_custom_call.1} parent=19 // pred_check
          %p134 = pneg %p74
        $region22: #{tpu_custom_call.1} parent=19 // pred_check_branch
          %136 = sbr.rel (%p134) target = $region24
        $region23: #{tpu_custom_call.1} parent=19 // pred_region
          %s137 = sand.u32 %s64, 1
          %s138 = scalar_lea.sflag [#allocation3], %s137
          %s139 = sand.u32 %s64, 1
          %s140 = smul.addr %s139, 4096
          %s141 = scalar_lea.vmem [#allocation2], %s140
          %s142 = smul.u32 1024, %s22
          %s143 = ssub.s32 2352, %s142
          %p144 = scmp.lt.s32.totalorder %s143, 1024
          %s145 = scalar_select %p144, %s143, 1024
          %s146 = smul.u32 64, %s145
          %s148 = ssub.s32 65536, %s146
          %149 = vsyncadd %s138, %s148
          %p150 = scmp.ne.s32.totalorder 0, %s146
          %s151 = smul.addr %s21, 2352
          %s152 = sadd.s32 %s142, %s151
          %s153 = smul.addr %s152, 64
          %s154 = scalar_lea.hbm %s1, %s153
          %s155 = smul.u32 %s145, 4
          %s156 = sshll.u32 %s155, 4
          %s157 = sshll.u32 %s141, 4
          %s158 = int_to_ptr.vmem [resolvable:$true] %s157
          %160 = dma.hbm_to_vmem [thread:$0]  (%p150), %s154, %s156, %s158, %s138
        $region24: #{tpu_custom_call.1} parent=19 // pred_fallthru
          _
      $region20: #{tpu_custom_call.1} parent=5 // pred_fallthru
        _
      %p161 = scmp.le.s32.totalorder 1, %s14
      %p162 = scmp.lt.s32.totalorder %s14, 4
      %p163 = pnand %p161, %p162
      %p164 = pneg %p163
      // Predicated region
      $region25: #{tpu_custom_call.1} parent=5 // pred_check
        _
      $region26: #{tpu_custom_call.1} parent=5 // pred_check_branch
        %166 = sbr.rel (%p163) target = $region28
      $region27: #{tpu_custom_call.1} parent=5 // pred_region
        %s167 = ssub.s32 %s14, 1
        %s168 = sand.u32 %s67, 1
        %s169 = scalar_lea.sflag [#allocation3], %s168
        %s170 = sand.u32 %s67, 1
        %s171 = smul.addr %s170, 4096
        %s172 = scalar_lea.vmem [#allocation2], %s171
        // Predicated region
        $region29: #{tpu_custom_call.1} parent=27 // pred_check
          %p173 = pneg %p80
        $region30: #{tpu_custom_call.1} parent=27 // pred_check_branch
          %175 = sbr.rel (%p173) target = $region32
        $region31: #{tpu_custom_call.1} parent=27 // pred_region
          %176 = dma.done %s169, 65536
        $region32: #{tpu_custom_call.1} parent=27 // pred_fallthru
          _
        %p177 = scmp.lt.s32.totalorder %s23, 0
        %s178 = scalar_select %p177, %s23, 0
        %s179 = smul.addr %s178, 4
        %s180 = scalar_lea.vmem %s0, %s179
        %p181 = pneg %p52
        %p182 = pneg %p49
        %s183 = sand.u32 %s67, 1
        %s184 = scalar_lea.sflag [#allocation3], %s183
        %s185 = sand.u32 %s67, 1
        %s186 = smul.addr %s185, 4096
        %s187 = scalar_lea.vmem [#allocation2], %s186
        %p188 = pneg %p80
        %p189 = pneg %p77
        %p190 = pneg %p108
        %p191 = pneg %p105
        %s192 = sand.u32 %s95, 1
        %s193 = scalar_lea.sflag [#allocation4], %s192
        %s194 = sand.u32 %s95, 1
        %s195 = smul.addr %s194, 4096
        %s196 = scalar_lea.vmem [#allocation5], %s195
        %p197 = scmp.lt.s32.totalorder %s23, 0
        %s198 = scalar_select %p197, %s23, 0
        %s199 = smul.addr %s198, 4
        %s200 = scalar_lea.vmem %s0, %s199
        %s201 = smul.u32 1024, %s24
        %s202 = ssub.s32 2352, %s201
        %p203 = scmp.lt.s32.totalorder %s202, 1024
        %s204 = scalar_select %p203, %s202, 1024
        %s205 = smul.u32 64, %s204
        %s206 = smul.u32 1024, %s24
        %s207 = ssub.s32 2352, %s206
        %p208 = scmp.lt.s32.totalorder %s207, 1024
        %s209 = scalar_select %p208, %s207, 1024
        %s210 = smul.u32 64, %s209
        %v211 = vld [vmem:[%s200] sm:$0xf]
        %v212 = vld [vmem:[%s172] sm:$0xff]
        %v213 = vld [vmem:[%s172 + $0x8] sm:$0xff]
        %v214 = vld [vmem:[%s172 + $0x10] sm:$0xff]
        %v215 = vld [vmem:[%s172 + $0x18] sm:$0xff]
        %v216 = vld [vmem:[%s172 + $0x20] sm:$0xff]
        %v217 = vld [vmem:[%s172 + $0x28] sm:$0xff]
        %v218 = vld [vmem:[%s172 + $0x30] sm:$0xff]
        %v219 = vld [vmem:[%s172 + $0x38] sm:$0xff]
        %v220 = vld [vmem:[%s172 + $0x40] sm:$0xff]
        %v221 = vld [vmem:[%s172 + $0x48] sm:$0xff]
        %v222 = vld [vmem:[%s172 + $0x50] sm:$0xff]
        %v223 = vld [vmem:[%s172 + $0x58] sm:$0xff]
        %v224 = vld [vmem:[%s172 + $0x60] sm:$0xff]
        %v225 = vld [vmem:[%s172 + $0x68] sm:$0xff]
        %v226 = vld [vmem:[%s172 + $0x70] sm:$0xff]
        %v227 = vld [vmem:[%s172 + $0x78] sm:$0xff]
        %v228 = vld [vmem:[%s172 + $0x80] sm:$0xff]
        %v229 = vld [vmem:[%s172 + $0x88] sm:$0xff]
        %v230 = vld [vmem:[%s172 + $0x90] sm:$0xff]
        %v231 = vld [vmem:[%s172 + $0x98] sm:$0xff]
        %v232 = vld [vmem:[%s172 + $0xa0] sm:$0xff]
        %v233 = vld [vmem:[%s172 + $0xa8] sm:$0xff]
        %v234 = vld [vmem:[%s172 + $0xb0] sm:$0xff]
        %v235 = vld [vmem:[%s172 + $0xb8] sm:$0xff]
        %v236 = vld [vmem:[%s172 + $0xc0] sm:$0xff]
        %v237 = vld [vmem:[%s172 + $0xc8] sm:$0xff]
        %v238 = vld [vmem:[%s172 + $0xd0] sm:$0xff]
        %v239 = vld [vmem:[%s172 + $0xd8] sm:$0xff]
        %v240 = vld [vmem:[%s172 + $0xe0] sm:$0xff]
        %v241 = vld [vmem:[%s172 + $0xe8] sm:$0xff]
        %v242 = vld [vmem:[%s172 + $0xf0] sm:$0xff]
        %v243 = vld [vmem:[%s172 + $0xf8] sm:$0xff]
        %v244 = vld [vmem:[%s172 + $0x100] sm:$0xff]
        %v245 = vld [vmem:[%s172 + $0x108] sm:$0xff]
        %v246 = vld [vmem:[%s172 + $0x110] sm:$0xff]
        %v247 = vld [vmem:[%s172 + $0x118] sm:$0xff]
        %v248 = vld [vmem:[%s172 + $0x120] sm:$0xff]
        %v249 = vld [vmem:[%s172 + $0x128] sm:$0xff]
        %v250 = vld [vmem:[%s172 + $0x130] sm:$0xff]
        %v251 = vld [vmem:[%s172 + $0x138] sm:$0xff]
        %v252 = vld [vmem:[%s172 + $0x140] sm:$0xff]
        %v253 = vld [vmem:[%s172 + $0x148] sm:$0xff]
        %v254 = vld [vmem:[%s172 + $0x150] sm:$0xff]
        %v255 = vld [vmem:[%s172 + $0x158] sm:$0xff]
        %v256 = vld [vmem:[%s172 + $0x160] sm:$0xff]
        %v257 = vld [vmem:[%s172 + $0x168] sm:$0xff]
        %v258 = vld [vmem:[%s172 + $0x170] sm:$0xff]
        %v259 = vld [vmem:[%s172 + $0x178] sm:$0xff]
        %v260 = vld [vmem:[%s172 + $0x180] sm:$0xff]
        %v261 = vld [vmem:[%s172 + $0x188] sm:$0xff]
        %v262 = vld [vmem:[%s172 + $0x190] sm:$0xff]
        %v263 = vld [vmem:[%s172 + $0x198] sm:$0xff]
        %v264 = vld [vmem:[%s172 + $0x1a0] sm:$0xff]
        %v265 = vld [vmem:[%s172 + $0x1a8] sm:$0xff]
        %v266 = vld [vmem:[%s172 + $0x1b0] sm:$0xff]
        %v267 = vld [vmem:[%s172 + $0x1b8] sm:$0xff]
        %v268 = vld [vmem:[%s172 + $0x1c0] sm:$0xff]
        %v269 = vld [vmem:[%s172 + $0x1c8] sm:$0xff]
        %v270 = vld [vmem:[%s172 + $0x1d0] sm:$0xff]
        %v271 = vld [vmem:[%s172 + $0x1d8] sm:$0xff]
        %v272 = vld [vmem:[%s172 + $0x1e0] sm:$0xff]
        %v273 = vld [vmem:[%s172 + $0x1e8] sm:$0xff]
        %v274 = vld [vmem:[%s172 + $0x1f0] sm:$0xff]
        %v275 = vld [vmem:[%s172 + $0x1f8] sm:$0xff]
        %v276 = vld [vmem:[%s172 + $0x200] sm:$0xff]
        %v277 = vld [vmem:[%s172 + $0x208] sm:$0xff]
        %v278 = vld [vmem:[%s172 + $0x210] sm:$0xff]
        %v279 = vld [vmem:[%s172 + $0x218] sm:$0xff]
        %v280 = vld [vmem:[%s172 + $0x220] sm:$0xff]
        %v281 = vld [vmem:[%s172 + $0x228] sm:$0xff]
        %v282 = vld [vmem:[%s172 + $0x230] sm:$0xff]
        %v283 = vld [vmem:[%s172 + $0x238] sm:$0xff]
        %v284 = vld [vmem:[%s172 + $0x240] sm:$0xff]
        %v285 = vld [vmem:[%s172 + $0x248] sm:$0xff]
        %v286 = vld [vmem:[%s172 + $0x250] sm:$0xff]
        %v287 = vld [vmem:[%s172 + $0x258] sm:$0xff]
        %v288 = vld [vmem:[%s172 + $0x260] sm:$0xff]
        %v289 = vld [vmem:[%s172 + $0x268] sm:$0xff]
        %v290 = vld [vmem:[%s172 + $0x270] sm:$0xff]
        %v291 = vld [vmem:[%s172 + $0x278] sm:$0xff]
        %v292 = vld [vmem:[%s172 + $0x280] sm:$0xff]
        %v293 = vld [vmem:[%s172 + $0x288] sm:$0xff]
        %v294 = vld [vmem:[%s172 + $0x290] sm:$0xff]
        %v295 = vld [vmem:[%s172 + $0x298] sm:$0xff]
        %v296 = vld [vmem:[%s172 + $0x2a0] sm:$0xff]
        %v297 = vld [vmem:[%s172 + $0x2a8] sm:$0xff]
        %v298 = vld [vmem:[%s172 + $0x2b0] sm:$0xff]
        %v299 = vld [vmem:[%s172 + $0x2b8] sm:$0xff]
        %v300 = vld [vmem:[%s172 + $0x2c0] sm:$0xff]
        %v301 = vld [vmem:[%s172 + $0x2c8] sm:$0xff]
        %v302 = vld [vmem:[%s172 + $0x2d0] sm:$0xff]
        %v303 = vld [vmem:[%s172 + $0x2d8] sm:$0xff]
        %v304 = vld [vmem:[%s172 + $0x2e0] sm:$0xff]
        %v305 = vld [vmem:[%s172 + $0x2e8] sm:$0xff]
        %v306 = vld [vmem:[%s172 + $0x2f0] sm:$0xff]
        %v307 = vld [vmem:[%s172 + $0x2f8] sm:$0xff]
        %v308 = vld [vmem:[%s172 + $0x300] sm:$0xff]
        %v309 = vld [vmem:[%s172 + $0x308] sm:$0xff]
        %v310 = vld [vmem:[%s172 + $0x310] sm:$0xff]
        %v311 = vld [vmem:[%s172 + $0x318] sm:$0xff]
        %v312 = vld [vmem:[%s172 + $0x320] sm:$0xff]
        %v313 = vld [vmem:[%s172 + $0x328] sm:$0xff]
        %v314 = vld [vmem:[%s172 + $0x330] sm:$0xff]
        %v315 = vld [vmem:[%s172 + $0x338] sm:$0xff]
        %v316 = vld [vmem:[%s172 + $0x340] sm:$0xff]
        %v317 = vld [vmem:[%s172 + $0x348] sm:$0xff]
        %v318 = vld [vmem:[%s172 + $0x350] sm:$0xff]
        %v319 = vld [vmem:[%s172 + $0x358] sm:$0xff]
        %v320 = vld [vmem:[%s172 + $0x360] sm:$0xff]
        %v321 = vld [vmem:[%s172 + $0x368] sm:$0xff]
        %v322 = vld [vmem:[%s172 + $0x370] sm:$0xff]
        %v323 = vld [vmem:[%s172 + $0x378] sm:$0xff]
        %v324 = vld [vmem:[%s172 + $0x380] sm:$0xff]
        %v325 = vld [vmem:[%s172 + $0x388] sm:$0xff]
        %v326 = vld [vmem:[%s172 + $0x390] sm:$0xff]
        %v327 = vld [vmem:[%s172 + $0x398] sm:$0xff]
        %v328 = vld [vmem:[%s172 + $0x3a0] sm:$0xff]
        %v329 = vld [vmem:[%s172 + $0x3a8] sm:$0xff]
        %v330 = vld [vmem:[%s172 + $0x3b0] sm:$0xff]
        %v331 = vld [vmem:[%s172 + $0x3b8] sm:$0xff]
        %v332 = vld [vmem:[%s172 + $0x3c0] sm:$0xff]
        %v333 = vld [vmem:[%s172 + $0x3c8] sm:$0xff]
        %v334 = vld [vmem:[%s172 + $0x3d0] sm:$0xff]
        %v335 = vld [vmem:[%s172 + $0x3d8] sm:$0xff]
        %v336 = vld [vmem:[%s172 + $0x3e0] sm:$0xff]
        %v337 = vld [vmem:[%s172 + $0x3e8] sm:$0xff]
        %v338 = vld [vmem:[%s172 + $0x3f0] sm:$0xff]
        %v339 = vld [vmem:[%s172 + $0x3f8] sm:$0xff]
        %v340 = vld [vmem:[%s172 + $0x400] sm:$0xff]
        %v341 = vld [vmem:[%s172 + $0x408] sm:$0xff]
        %v342 = vld [vmem:[%s172 + $0x410] sm:$0xff]
        %v343 = vld [vmem:[%s172 + $0x418] sm:$0xff]
        %v344 = vld [vmem:[%s172 + $0x420] sm:$0xff]
        %v345 = vld [vmem:[%s172 + $0x428] sm:$0xff]
        %v346 = vld [vmem:[%s172 + $0x430] sm:$0xff]
        %v347 = vld [vmem:[%s172 + $0x438] sm:$0xff]
        %v348 = vld [vmem:[%s172 + $0x440] sm:$0xff]
        %v349 = vld [vmem:[%s172 + $0x448] sm:$0xff]
        %v350 = vld [vmem:[%s172 + $0x450] sm:$0xff]
        %v351 = vld [vmem:[%s172 + $0x458] sm:$0xff]
        %v352 = vld [vmem:[%s172 + $0x460] sm:$0xff]
        %v353 = vld [vmem:[%s172 + $0x468] sm:$0xff]
        %v354 = vld [vmem:[%s172 + $0x470] sm:$0xff]
        %v355 = vld [vmem:[%s172 + $0x478] sm:$0xff]
        %v356 = vld [vmem:[%s172 + $0x480] sm:$0xff]
        %v357 = vld [vmem:[%s172 + $0x488] sm:$0xff]
        %v358 = vld [vmem:[%s172 + $0x490] sm:$0xff]
        %v359 = vld [vmem:[%s172 + $0x498] sm:$0xff]
        %v360 = vld [vmem:[%s172 + $0x4a0] sm:$0xff]
        %v361 = vld [vmem:[%s172 + $0x4a8] sm:$0xff]
        %v362 = vld [vmem:[%s172 + $0x4b0] sm:$0xff]
        %v363 = vld [vmem:[%s172 + $0x4b8] sm:$0xff]
        %v364 = vld [vmem:[%s172 + $0x4c0] sm:$0xff]
        %v365 = vld [vmem:[%s172 + $0x4c8] sm:$0xff]
        %v366 = vld [vmem:[%s172 + $0x4d0] sm:$0xff]
        %v367 = vld [vmem:[%s172 + $0x4d8] sm:$0xff]
        %v368 = vld [vmem:[%s172 + $0x4e0] sm:$0xff]
        %v369 = vld [vmem:[%s172 + $0x4e8] sm:$0xff]
        %v370 = vld [vmem:[%s172 + $0x4f0] sm:$0xff]
        %v371 = vld [vmem:[%s172 + $0x4f8] sm:$0xff]
        %v372 = vld [vmem:[%s172 + $0x500] sm:$0xff]
        %v373 = vld [vmem:[%s172 + $0x508] sm:$0xff]
        %v374 = vld [vmem:[%s172 + $0x510] sm:$0xff]
        %v375 = vld [vmem:[%s172 + $0x518] sm:$0xff]
        %v376 = vld [vmem:[%s172 + $0x520] sm:$0xff]
        %v377 = vld [vmem:[%s172 + $0x528] sm:$0xff]
        %v378 = vld [vmem:[%s172 + $0x530] sm:$0xff]
        %v379 = vld [vmem:[%s172 + $0x538] sm:$0xff]
        %v380 = vld [vmem:[%s172 + $0x540] sm:$0xff]
        %v381 = vld [vmem:[%s172 + $0x548] sm:$0xff]
        %v382 = vld [vmem:[%s172 + $0x550] sm:$0xff]
        %v383 = vld [vmem:[%s172 + $0x558] sm:$0xff]
        %v384 = vld [vmem:[%s172 + $0x560] sm:$0xff]
        %v385 = vld [vmem:[%s172 + $0x568] sm:$0xff]
        %v386 = vld [vmem:[%s172 + $0x570] sm:$0xff]
        %v387 = vld [vmem:[%s172 + $0x578] sm:$0xff]
        %v388 = vld [vmem:[%s172 + $0x580] sm:$0xff]
        %v389 = vld [vmem:[%s172 + $0x588] sm:$0xff]
        %v390 = vld [vmem:[%s172 + $0x590] sm:$0xff]
        %v391 = vld [vmem:[%s172 + $0x598] sm:$0xff]
        %v392 = vld [vmem:[%s172 + $0x5a0] sm:$0xff]
        %v393 = vld [vmem:[%s172 + $0x5a8] sm:$0xff]
        %v394 = vld [vmem:[%s172 + $0x5b0] sm:$0xff]
        %v395 = vld [vmem:[%s172 + $0x5b8] sm:$0xff]
        %v396 = vld [vmem:[%s172 + $0x5c0] sm:$0xff]
        %v397 = vld [vmem:[%s172 + $0x5c8] sm:$0xff]
        %v398 = vld [vmem:[%s172 + $0x5d0] sm:$0xff]
        %v399 = vld [vmem:[%s172 + $0x5d8] sm:$0xff]
        %v400 = vld [vmem:[%s172 + $0x5e0] sm:$0xff]
        %v401 = vld [vmem:[%s172 + $0x5e8] sm:$0xff]
        %v402 = vld [vmem:[%s172 + $0x5f0] sm:$0xff]
        %v403 = vld [vmem:[%s172 + $0x5f8] sm:$0xff]
        %v404 = vld [vmem:[%s172 + $0x600] sm:$0xff]
        %v405 = vld [vmem:[%s172 + $0x608] sm:$0xff]
        %v406 = vld [vmem:[%s172 + $0x610] sm:$0xff]
        %v407 = vld [vmem:[%s172 + $0x618] sm:$0xff]
        %v408 = vld [vmem:[%s172 + $0x620] sm:$0xff]
        %v409 = vld [vmem:[%s172 + $0x628] sm:$0xff]
        %v410 = vld [vmem:[%s172 + $0x630] sm:$0xff]
        %v411 = vld [vmem:[%s172 + $0x638] sm:$0xff]
        %v412 = vld [vmem:[%s172 + $0x640] sm:$0xff]
        %v413 = vld [vmem:[%s172 + $0x648] sm:$0xff]
        %v414 = vld [vmem:[%s172 + $0x650] sm:$0xff]
        %v415 = vld [vmem:[%s172 + $0x658] sm:$0xff]
        %v416 = vld [vmem:[%s172 + $0x660] sm:$0xff]
        %v417 = vld [vmem:[%s172 + $0x668] sm:$0xff]
        %v418 = vld [vmem:[%s172 + $0x670] sm:$0xff]
        %v419 = vld [vmem:[%s172 + $0x678] sm:$0xff]
        %v420 = vld [vmem:[%s172 + $0x680] sm:$0xff]
        %v421 = vld [vmem:[%s172 + $0x688] sm:$0xff]
        %v422 = vld [vmem:[%s172 + $0x690] sm:$0xff]
        %v423 = vld [vmem:[%s172 + $0x698] sm:$0xff]
        %v424 = vld [vmem:[%s172 + $0x6a0] sm:$0xff]
        %v425 = vld [vmem:[%s172 + $0x6a8] sm:$0xff]
        %v426 = vld [vmem:[%s172 + $0x6b0] sm:$0xff]
        %v427 = vld [vmem:[%s172 + $0x6b8] sm:$0xff]
        %v428 = vld [vmem:[%s172 + $0x6c0] sm:$0xff]
        %v429 = vld [vmem:[%s172 + $0x6c8] sm:$0xff]
        %v430 = vld [vmem:[%s172 + $0x6d0] sm:$0xff]
        %v431 = vld [vmem:[%s172 + $0x6d8] sm:$0xff]
        %v432 = vld [vmem:[%s172 + $0x6e0] sm:$0xff]
        %v433 = vld [vmem:[%s172 + $0x6e8] sm:$0xff]
        %v434 = vld [vmem:[%s172 + $0x6f0] sm:$0xff]
        %v435 = vld [vmem:[%s172 + $0x6f8] sm:$0xff]
        %v436 = vld [vmem:[%s172 + $0x700] sm:$0xff]
        %v437 = vld [vmem:[%s172 + $0x708] sm:$0xff]
        %v438 = vld [vmem:[%s172 + $0x710] sm:$0xff]
        %v439 = vld [vmem:[%s172 + $0x718] sm:$0xff]
        %v440 = vld [vmem:[%s172 + $0x720] sm:$0xff]
        %v441 = vld [vmem:[%s172 + $0x728] sm:$0xff]
        %v442 = vld [vmem:[%s172 + $0x730] sm:$0xff]
        %v443 = vld [vmem:[%s172 + $0x738] sm:$0xff]
        %v444 = vld [vmem:[%s172 + $0x740] sm:$0xff]
        %v445 = vld [vmem:[%s172 + $0x748] sm:$0xff]
        %v446 = vld [vmem:[%s172 + $0x750] sm:$0xff]
        %v447 = vld [vmem:[%s172 + $0x758] sm:$0xff]
        %v448 = vld [vmem:[%s172 + $0x760] sm:$0xff]
        %v449 = vld [vmem:[%s172 + $0x768] sm:$0xff]
        %v450 = vld [vmem:[%s172 + $0x770] sm:$0xff]
        %v451 = vld [vmem:[%s172 + $0x778] sm:$0xff]
        %v452 = vld [vmem:[%s172 + $0x780] sm:$0xff]
        %v453 = vld [vmem:[%s172 + $0x788] sm:$0xff]
        %v454 = vld [vmem:[%s172 + $0x790] sm:$0xff]
        %v455 = vld [vmem:[%s172 + $0x798] sm:$0xff]
        %v456 = vld [vmem:[%s172 + $0x7a0] sm:$0xff]
        %v457 = vld [vmem:[%s172 + $0x7a8] sm:$0xff]
        %v458 = vld [vmem:[%s172 + $0x7b0] sm:$0xff]
        %v459 = vld [vmem:[%s172 + $0x7b8] sm:$0xff]
        %v460 = vld [vmem:[%s172 + $0x7c0] sm:$0xff]
        %v461 = vld [vmem:[%s172 + $0x7c8] sm:$0xff]
        %v462 = vld [vmem:[%s172 + $0x7d0] sm:$0xff]
        %v463 = vld [vmem:[%s172 + $0x7d8] sm:$0xff]
        %v464 = vld [vmem:[%s172 + $0x7e0] sm:$0xff]
        %v465 = vld [vmem:[%s172 + $0x7e8] sm:$0xff]
        %v466 = vld [vmem:[%s172 + $0x7f0] sm:$0xff]
        %v467 = vld [vmem:[%s172 + $0x7f8] sm:$0xff]
        %v468 = vld [vmem:[%s172 + $0x800] sm:$0xff]
        %v469 = vld [vmem:[%s172 + $0x808] sm:$0xff]
        %v470 = vld [vmem:[%s172 + $0x810] sm:$0xff]
        %v471 = vld [vmem:[%s172 + $0x818] sm:$0xff]
        %v472 = vld [vmem:[%s172 + $0x820] sm:$0xff]
        %v473 = vld [vmem:[%s172 + $0x828] sm:$0xff]
        %v474 = vld [vmem:[%s172 + $0x830] sm:$0xff]
        %v475 = vld [vmem:[%s172 + $0x838] sm:$0xff]
        %v476 = vld [vmem:[%s172 + $0x840] sm:$0xff]
        %v477 = vld [vmem:[%s172 + $0x848] sm:$0xff]
        %v478 = vld [vmem:[%s172 + $0x850] sm:$0xff]
        %v479 = vld [vmem:[%s172 + $0x858] sm:$0xff]
        %v480 = vld [vmem:[%s172 + $0x860] sm:$0xff]
        %v481 = vld [vmem:[%s172 + $0x868] sm:$0xff]
        %v482 = vld [vmem:[%s172 + $0x870] sm:$0xff]
        %v483 = vld [vmem:[%s172 + $0x878] sm:$0xff]
        %v484 = vld [vmem:[%s172 + $0x880] sm:$0xff]
        %v485 = vld [vmem:[%s172 + $0x888] sm:$0xff]
        %v486 = vld [vmem:[%s172 + $0x890] sm:$0xff]
        %v487 = vld [vmem:[%s172 + $0x898] sm:$0xff]
        %v488 = vld [vmem:[%s172 + $0x8a0] sm:$0xff]
        %v489 = vld [vmem:[%s172 + $0x8a8] sm:$0xff]
        %v490 = vld [vmem:[%s172 + $0x8b0] sm:$0xff]
        %v491 = vld [vmem:[%s172 + $0x8b8] sm:$0xff]
        %v492 = vld [vmem:[%s172 + $0x8c0] sm:$0xff]
        %v493 = vld [vmem:[%s172 + $0x8c8] sm:$0xff]
        %v494 = vld [vmem:[%s172 + $0x8d0] sm:$0xff]
        %v495 = vld [vmem:[%s172 + $0x8d8] sm:$0xff]
        %v496 = vld [vmem:[%s172 + $0x8e0] sm:$0xff]
        %v497 = vld [vmem:[%s172 + $0x8e8] sm:$0xff]
        %v498 = vld [vmem:[%s172 + $0x8f0] sm:$0xff]
        %v499 = vld [vmem:[%s172 + $0x8f8] sm:$0xff]
        %v500 = vld [vmem:[%s172 + $0x900] sm:$0xff]
        %v501 = vld [vmem:[%s172 + $0x908] sm:$0xff]
        %v502 = vld [vmem:[%s172 + $0x910] sm:$0xff]
        %v503 = vld [vmem:[%s172 + $0x918] sm:$0xff]
        %v504 = vld [vmem:[%s172 + $0x920] sm:$0xff]
        %v505 = vld [vmem:[%s172 + $0x928] sm:$0xff]
        %v506 = vld [vmem:[%s172 + $0x930] sm:$0xff]
        %v507 = vld [vmem:[%s172 + $0x938] sm:$0xff]
        %v508 = vld [vmem:[%s172 + $0x940] sm:$0xff]
        %v509 = vld [vmem:[%s172 + $0x948] sm:$0xff]
        %v510 = vld [vmem:[%s172 + $0x950] sm:$0xff]
        %v511 = vld [vmem:[%s172 + $0x958] sm:$0xff]
        %v512 = vld [vmem:[%s172 + $0x960] sm:$0xff]
        %v513 = vld [vmem:[%s172 + $0x968] sm:$0xff]
        %v514 = vld [vmem:[%s172 + $0x970] sm:$0xff]
        %v515 = vld [vmem:[%s172 + $0x978] sm:$0xff]
        %v516 = vld [vmem:[%s172 + $0x980] sm:$0xff]
        %v517 = vld [vmem:[%s172 + $0x988] sm:$0xff]
        %v518 = vld [vmem:[%s172 + $0x990] sm:$0xff]
        %v519 = vld [vmem:[%s172 + $0x998] sm:$0xff]
        %v520 = vld [vmem:[%s172 + $0x9a0] sm:$0xff]
        %v521 = vld [vmem:[%s172 + $0x9a8] sm:$0xff]
        %v522 = vld [vmem:[%s172 + $0x9b0] sm:$0xff]
        %v523 = vld [vmem:[%s172 + $0x9b8] sm:$0xff]
        %v524 = vld [vmem:[%s172 + $0x9c0] sm:$0xff]
        %v525 = vld [vmem:[%s172 + $0x9c8] sm:$0xff]
        %v526 = vld [vmem:[%s172 + $0x9d0] sm:$0xff]
        %v527 = vld [vmem:[%s172 + $0x9d8] sm:$0xff]
        %v528 = vld [vmem:[%s172 + $0x9e0] sm:$0xff]
        %v529 = vld [vmem:[%s172 + $0x9e8] sm:$0xff]
        %v530 = vld [vmem:[%s172 + $0x9f0] sm:$0xff]
        %v531 = vld [vmem:[%s172 + $0x9f8] sm:$0xff]
        %v532 = vld [vmem:[%s172 + $0xa00] sm:$0xff]
        %v533 = vld [vmem:[%s172 + $0xa08] sm:$0xff]
        %v534 = vld [vmem:[%s172 + $0xa10] sm:$0xff]
        %v535 = vld [vmem:[%s172 + $0xa18] sm:$0xff]
        %v536 = vld [vmem:[%s172 + $0xa20] sm:$0xff]
        %v537 = vld [vmem:[%s172 + $0xa28] sm:$0xff]
        %v538 = vld [vmem:[%s172 + $0xa30] sm:$0xff]
        %v539 = vld [vmem:[%s172 + $0xa38] sm:$0xff]
        %v540 = vld [vmem:[%s172 + $0xa40] sm:$0xff]
        %v541 = vld [vmem:[%s172 + $0xa48] sm:$0xff]
        %v542 = vld [vmem:[%s172 + $0xa50] sm:$0xff]
        %v543 = vld [vmem:[%s172 + $0xa58] sm:$0xff]
        %v544 = vld [vmem:[%s172 + $0xa60] sm:$0xff]
        %v545 = vld [vmem:[%s172 + $0xa68] sm:$0xff]
        %v546 = vld [vmem:[%s172 + $0xa70] sm:$0xff]
        %v547 = vld [vmem:[%s172 + $0xa78] sm:$0xff]
        %v548 = vld [vmem:[%s172 + $0xa80] sm:$0xff]
        %v549 = vld [vmem:[%s172 + $0xa88] sm:$0xff]
        %v550 = vld [vmem:[%s172 + $0xa90] sm:$0xff]
        %v551 = vld [vmem:[%s172 + $0xa98] sm:$0xff]
        %v552 = vld [vmem:[%s172 + $0xaa0] sm:$0xff]
        %v553 = vld [vmem:[%s172 + $0xaa8] sm:$0xff]
        %v554 = vld [vmem:[%s172 + $0xab0] sm:$0xff]
        %v555 = vld [vmem:[%s172 + $0xab8] sm:$0xff]
        %v556 = vld [vmem:[%s172 + $0xac0] sm:$0xff]
        %v557 = vld [vmem:[%s172 + $0xac8] sm:$0xff]
        %v558 = vld [vmem:[%s172 + $0xad0] sm:$0xff]
        %v559 = vld [vmem:[%s172 + $0xad8] sm:$0xff]
        %v560 = vld [vmem:[%s172 + $0xae0] sm:$0xff]
        %v561 = vld [vmem:[%s172 + $0xae8] sm:$0xff]
        %v562 = vld [vmem:[%s172 + $0xaf0] sm:$0xff]
        %v563 = vld [vmem:[%s172 + $0xaf8] sm:$0xff]
        %v564 = vld [vmem:[%s172 + $0xb00] sm:$0xff]
        %v565 = vld [vmem:[%s172 + $0xb08] sm:$0xff]
        %v566 = vld [vmem:[%s172 + $0xb10] sm:$0xff]
        %v567 = vld [vmem:[%s172 + $0xb18] sm:$0xff]
        %v568 = vld [vmem:[%s172 + $0xb20] sm:$0xff]
        %v569 = vld [vmem:[%s172 + $0xb28] sm:$0xff]
        %v570 = vld [vmem:[%s172 + $0xb30] sm:$0xff]
        %v571 = vld [vmem:[%s172 + $0xb38] sm:$0xff]
        %v572 = vld [vmem:[%s172 + $0xb40] sm:$0xff]
        %v573 = vld [vmem:[%s172 + $0xb48] sm:$0xff]
        %v574 = vld [vmem:[%s172 + $0xb50] sm:$0xff]
        %v575 = vld [vmem:[%s172 + $0xb58] sm:$0xff]
        %v576 = vld [vmem:[%s172 + $0xb60] sm:$0xff]
        %v577 = vld [vmem:[%s172 + $0xb68] sm:$0xff]
        %v578 = vld [vmem:[%s172 + $0xb70] sm:$0xff]
        %v579 = vld [vmem:[%s172 + $0xb78] sm:$0xff]
        %v580 = vld [vmem:[%s172 + $0xb80] sm:$0xff]
        %v581 = vld [vmem:[%s172 + $0xb88] sm:$0xff]
        %v582 = vld [vmem:[%s172 + $0xb90] sm:$0xff]
        %v583 = vld [vmem:[%s172 + $0xb98] sm:$0xff]
        %v584 = vld [vmem:[%s172 + $0xba0] sm:$0xff]
        %v585 = vld [vmem:[%s172 + $0xba8] sm:$0xff]
        %v586 = vld [vmem:[%s172 + $0xbb0] sm:$0xff]
        %v587 = vld [vmem:[%s172 + $0xbb8] sm:$0xff]
        %v588 = vld [vmem:[%s172 + $0xbc0] sm:$0xff]
        %v589 = vld [vmem:[%s172 + $0xbc8] sm:$0xff]
        %v590 = vld [vmem:[%s172 + $0xbd0] sm:$0xff]
        %v591 = vld [vmem:[%s172 + $0xbd8] sm:$0xff]
        %v592 = vld [vmem:[%s172 + $0xbe0] sm:$0xff]
        %v593 = vld [vmem:[%s172 + $0xbe8] sm:$0xff]
        %v594 = vld [vmem:[%s172 + $0xbf0] sm:$0xff]
        %v595 = vld [vmem:[%s172 + $0xbf8] sm:$0xff]
        %v596 = vld [vmem:[%s172 + $0xc00] sm:$0xff]
        %v597 = vld [vmem:[%s172 + $0xc08] sm:$0xff]
        %v598 = vld [vmem:[%s172 + $0xc10] sm:$0xff]
        %v599 = vld [vmem:[%s172 + $0xc18] sm:$0xff]
        %v600 = vld [vmem:[%s172 + $0xc20] sm:$0xff]
        %v601 = vld [vmem:[%s172 + $0xc28] sm:$0xff]
        %v602 = vld [vmem:[%s172 + $0xc30] sm:$0xff]
        %v603 = vld [vmem:[%s172 + $0xc38] sm:$0xff]
        %v604 = vld [vmem:[%s172 + $0xc40] sm:$0xff]
        %v605 = vld [vmem:[%s172 + $0xc48] sm:$0xff]
        %v606 = vld [vmem:[%s172 + $0xc50] sm:$0xff]
        %v607 = vld [vmem:[%s172 + $0xc58] sm:$0xff]
        %v608 = vld [vmem:[%s172 + $0xc60] sm:$0xff]
        %v609 = vld [vmem:[%s172 + $0xc68] sm:$0xff]
        %v610 = vld [vmem:[%s172 + $0xc70] sm:$0xff]
        %v611 = vld [vmem:[%s172 + $0xc78] sm:$0xff]
        %v612 = vld [vmem:[%s172 + $0xc80] sm:$0xff]
        %v613 = vld [vmem:[%s172 + $0xc88] sm:$0xff]
        %v614 = vld [vmem:[%s172 + $0xc90] sm:$0xff]
        %v615 = vld [vmem:[%s172 + $0xc98] sm:$0xff]
        %v616 = vld [vmem:[%s172 + $0xca0] sm:$0xff]
        %v617 = vld [vmem:[%s172 + $0xca8] sm:$0xff]
        %v618 = vld [vmem:[%s172 + $0xcb0] sm:$0xff]
        %v619 = vld [vmem:[%s172 + $0xcb8] sm:$0xff]
        %v620 = vld [vmem:[%s172 + $0xcc0] sm:$0xff]
        %v621 = vld [vmem:[%s172 + $0xcc8] sm:$0xff]
        %v622 = vld [vmem:[%s172 + $0xcd0] sm:$0xff]
        %v623 = vld [vmem:[%s172 + $0xcd8] sm:$0xff]
        %v624 = vld [vmem:[%s172 + $0xce0] sm:$0xff]
        %v625 = vld [vmem:[%s172 + $0xce8] sm:$0xff]
        %v626 = vld [vmem:[%s172 + $0xcf0] sm:$0xff]
        %v627 = vld [vmem:[%s172 + $0xcf8] sm:$0xff]
        %v628 = vld [vmem:[%s172 + $0xd00] sm:$0xff]
        %v629 = vld [vmem:[%s172 + $0xd08] sm:$0xff]
        %v630 = vld [vmem:[%s172 + $0xd10] sm:$0xff]
        %v631 = vld [vmem:[%s172 + $0xd18] sm:$0xff]
        %v632 = vld [vmem:[%s172 + $0xd20] sm:$0xff]
        %v633 = vld [vmem:[%s172 + $0xd28] sm:$0xff]
        %v634 = vld [vmem:[%s172 + $0xd30] sm:$0xff]
        %v635 = vld [vmem:[%s172 + $0xd38] sm:$0xff]
        %v636 = vld [vmem:[%s172 + $0xd40] sm:$0xff]
        %v637 = vld [vmem:[%s172 + $0xd48] sm:$0xff]
        %v638 = vld [vmem:[%s172 + $0xd50] sm:$0xff]
        %v639 = vld [vmem:[%s172 + $0xd58] sm:$0xff]
        %v640 = vld [vmem:[%s172 + $0xd60] sm:$0xff]
        %v641 = vld [vmem:[%s172 + $0xd68] sm:$0xff]
        %v642 = vld [vmem:[%s172 + $0xd70] sm:$0xff]
        %v643 = vld [vmem:[%s172 + $0xd78] sm:$0xff]
        %v644 = vld [vmem:[%s172 + $0xd80] sm:$0xff]
        %v645 = vld [vmem:[%s172 + $0xd88] sm:$0xff]
        %v646 = vld [vmem:[%s172 + $0xd90] sm:$0xff]
        %v647 = vld [vmem:[%s172 + $0xd98] sm:$0xff]
        %v648 = vld [vmem:[%s172 + $0xda0] sm:$0xff]
        %v649 = vld [vmem:[%s172 + $0xda8] sm:$0xff]
        %v650 = vld [vmem:[%s172 + $0xdb0] sm:$0xff]
        %v651 = vld [vmem:[%s172 + $0xdb8] sm:$0xff]
        %v652 = vld [vmem:[%s172 + $0xdc0] sm:$0xff]
        %v653 = vld [vmem:[%s172 + $0xdc8] sm:$0xff]
        %v654 = vld [vmem:[%s172 + $0xdd0] sm:$0xff]
        %v655 = vld [vmem:[%s172 + $0xdd8] sm:$0xff]
        %v656 = vld [vmem:[%s172 + $0xde0] sm:$0xff]
        %v657 = vld [vmem:[%s172 + $0xde8] sm:$0xff]
        %v658 = vld [vmem:[%s172 + $0xdf0] sm:$0xff]
        %v659 = vld [vmem:[%s172 + $0xdf8] sm:$0xff]
        %v660 = vld [vmem:[%s172 + $0xe00] sm:$0xff]
        %v661 = vld [vmem:[%s172 + $0xe08] sm:$0xff]
        %v662 = vld [vmem:[%s172 + $0xe10] sm:$0xff]
        %v663 = vld [vmem:[%s172 + $0xe18] sm:$0xff]
        %v664 = vld [vmem:[%s172 + $0xe20] sm:$0xff]
        %v665 = vld [vmem:[%s172 + $0xe28] sm:$0xff]
        %v666 = vld [vmem:[%s172 + $0xe30] sm:$0xff]
        %v667 = vld [vmem:[%s172 + $0xe38] sm:$0xff]
        %v668 = vld [vmem:[%s172 + $0xe40] sm:$0xff]
        %v669 = vld [vmem:[%s172 + $0xe48] sm:$0xff]
        %v670 = vld [vmem:[%s172 + $0xe50] sm:$0xff]
        %v671 = vld [vmem:[%s172 + $0xe58] sm:$0xff]
        %v672 = vld [vmem:[%s172 + $0xe60] sm:$0xff]
        %v673 = vld [vmem:[%s172 + $0xe68] sm:$0xff]
        %v674 = vld [vmem:[%s172 + $0xe70] sm:$0xff]
        %v675 = vld [vmem:[%s172 + $0xe78] sm:$0xff]
        %v676 = vld [vmem:[%s172 + $0xe80] sm:$0xff]
        %v677 = vld [vmem:[%s172 + $0xe88] sm:$0xff]
        %v678 = vld [vmem:[%s172 + $0xe90] sm:$0xff]
        %v679 = vld [vmem:[%s172 + $0xe98] sm:$0xff]
        %v680 = vld [vmem:[%s172 + $0xea0] sm:$0xff]
        %v681 = vld [vmem:[%s172 + $0xea8] sm:$0xff]
        %v682 = vld [vmem:[%s172 + $0xeb0] sm:$0xff]
        %v683 = vld [vmem:[%s172 + $0xeb8] sm:$0xff]
        %v684 = vld [vmem:[%s172 + $0xec0] sm:$0xff]
        %v685 = vld [vmem:[%s172 + $0xec8] sm:$0xff]
        %v686 = vld [vmem:[%s172 + $0xed0] sm:$0xff]
        %v687 = vld [vmem:[%s172 + $0xed8] sm:$0xff]
        %v688 = vld [vmem:[%s172 + $0xee0] sm:$0xff]
        %v689 = vld [vmem:[%s172 + $0xee8] sm:$0xff]
        %v690 = vld [vmem:[%s172 + $0xef0] sm:$0xff]
        %v691 = vld [vmem:[%s172 + $0xef8] sm:$0xff]
        %v692 = vld [vmem:[%s172 + $0xf00] sm:$0xff]
        %v693 = vld [vmem:[%s172 + $0xf08] sm:$0xff]
        %v694 = vld [vmem:[%s172 + $0xf10] sm:$0xff]
        %v695 = vld [vmem:[%s172 + $0xf18] sm:$0xff]
        %v696 = vld [vmem:[%s172 + $0xf20] sm:$0xff]
        %v697 = vld [vmem:[%s172 + $0xf28] sm:$0xff]
        %v698 = vld [vmem:[%s172 + $0xf30] sm:$0xff]
        %v699 = vld [vmem:[%s172 + $0xf38] sm:$0xff]
        %v700 = vld [vmem:[%s172 + $0xf40] sm:$0xff]
        %v701 = vld [vmem:[%s172 + $0xf48] sm:$0xff]
        %v702 = vld [vmem:[%s172 + $0xf50] sm:$0xff]
        %v703 = vld [vmem:[%s172 + $0xf58] sm:$0xff]
        %v704 = vld [vmem:[%s172 + $0xf60] sm:$0xff]
        %v705 = vld [vmem:[%s172 + $0xf68] sm:$0xff]
        %v706 = vld [vmem:[%s172 + $0xf70] sm:$0xff]
        %v707 = vld [vmem:[%s172 + $0xf78] sm:$0xff]
        %v708 = vld [vmem:[%s172 + $0xf80] sm:$0xff]
        %v709 = vld [vmem:[%s172 + $0xf88] sm:$0xff]
        %v710 = vld [vmem:[%s172 + $0xf90] sm:$0xff]
        %v711 = vld [vmem:[%s172 + $0xf98] sm:$0xff]
        %v712 = vld [vmem:[%s172 + $0xfa0] sm:$0xff]
        %v713 = vld [vmem:[%s172 + $0xfa8] sm:$0xff]
        %v714 = vld [vmem:[%s172 + $0xfb0] sm:$0xff]
        %v715 = vld [vmem:[%s172 + $0xfb8] sm:$0xff]
        %v716 = vld [vmem:[%s172 + $0xfc0] sm:$0xff]
        %v717 = vld [vmem:[%s172 + $0xfc8] sm:$0xff]
        %v718 = vld [vmem:[%s172 + $0xfd0] sm:$0xff]
        %v719 = vld [vmem:[%s172 + $0xfd8] sm:$0xff]
        %v720 = vld [vmem:[%s172 + $0xfe0] sm:$0xff]
        %v721 = vld [vmem:[%s172 + $0xfe8] sm:$0xff]
        %v722 = vld [vmem:[%s172 + $0xff0] sm:$0xff]
        %v723 = vld [vmem:[%s172 + $0xff8] sm:$0xff]
        %725 = vset.pattern.permute.xlu0 0
        %726 = vperm.xlu0 %725, %v211
        %v727 = vpop.permute.xlu0 %726
        %v729 = vunpack.c.l.s4 839922192
        %v730 = vunpack.c.0.s8 %v729
        %v731 = vlaneseq
        %v732 = vshrl.u32 %v731, 7
        %v733 = vsub.s32 %v730, %v732
        %v734 = vrot.slane %v727, %v733
        %v736 = vmul.f32 %v212, %v734
        %v737 = vmul.f32 %v213, %v734
        %v738 = vmul.f32 %v214, %v734
        %v739 = vmul.f32 %v215, %v734
        %v740 = vmul.f32 %v216, %v734
        %v741 = vmul.f32 %v217, %v734
        %v742 = vmul.f32 %v218, %v734
        %v743 = vmul.f32 %v219, %v734
        %v744 = vmul.f32 %v220, %v734
        %v745 = vmul.f32 %v221, %v734
        %v746 = vmul.f32 %v222, %v734
        %v747 = vmul.f32 %v223, %v734
        %v748 = vmul.f32 %v224, %v734
        %v749 = vmul.f32 %v225, %v734
        %v750 = vmul.f32 %v226, %v734
        %v751 = vmul.f32 %v227, %v734
        %v752 = vmul.f32 %v228, %v734
        %v753 = vmul.f32 %v229, %v734
        %v754 = vmul.f32 %v230, %v734
        %v755 = vmul.f32 %v231, %v734
        %v756 = vmul.f32 %v232, %v734
        %v757 = vmul.f32 %v233, %v734
        %v758 = vmul.f32 %v234, %v734
        %v759 = vmul.f32 %v235, %v734
        %v760 = vmul.f32 %v236, %v734
        %v761 = vmul.f32 %v237, %v734
        %v762 = vmul.f32 %v238, %v734
        %v763 = vmul.f32 %v239, %v734
        %v764 = vmul.f32 %v240, %v734
        %v765 = vmul.f32 %v241, %v734
        %v766 = vmul.f32 %v242, %v734
        %v767 = vmul.f32 %v243, %v734
        %v768 = vmul.f32 %v244, %v734
        %v769 = vmul.f32 %v245, %v734
        %v770 = vmul.f32 %v246, %v734
        %v771 = vmul.f32 %v247, %v734
        %v772 = vmul.f32 %v248, %v734
        %v773 = vmul.f32 %v249, %v734
        %v774 = vmul.f32 %v250, %v734
        %v775 = vmul.f32 %v251, %v734
        %v776 = vmul.f32 %v252, %v734
        %v777 = vmul.f32 %v253, %v734
        %v778 = vmul.f32 %v254, %v734
        %v779 = vmul.f32 %v255, %v734
        %v780 = vmul.f32 %v256, %v734
        %v781 = vmul.f32 %v257, %v734
        %v782 = vmul.f32 %v258, %v734
        %v783 = vmul.f32 %v259, %v734
        %v784 = vmul.f32 %v260, %v734
        %v785 = vmul.f32 %v261, %v734
        %v786 = vmul.f32 %v262, %v734
        %v787 = vmul.f32 %v263, %v734
        %v788 = vmul.f32 %v264, %v734
        %v789 = vmul.f32 %v265, %v734
        %v790 = vmul.f32 %v266, %v734
        %v791 = vmul.f32 %v267, %v734
        %v792 = vmul.f32 %v268, %v734
        %v793 = vmul.f32 %v269, %v734
        %v794 = vmul.f32 %v270, %v734
        %v795 = vmul.f32 %v271, %v734
        %v796 = vmul.f32 %v272, %v734
        %v797 = vmul.f32 %v273, %v734
        %v798 = vmul.f32 %v274, %v734
        %v799 = vmul.f32 %v275, %v734
        %v800 = vmul.f32 %v276, %v734
        %v801 = vmul.f32 %v277, %v734
        %v802 = vmul.f32 %v278, %v734
        %v803 = vmul.f32 %v279, %v734
        %v804 = vmul.f32 %v280, %v734
        %v805 = vmul.f32 %v281, %v734
        %v806 = vmul.f32 %v282, %v734
        %v807 = vmul.f32 %v283, %v734
        %v808 = vmul.f32 %v284, %v734
        %v809 = vmul.f32 %v285, %v734
        %v810 = vmul.f32 %v286, %v734
        %v811 = vmul.f32 %v287, %v734
        %v812 = vmul.f32 %v288, %v734
        %v813 = vmul.f32 %v289, %v734
        %v814 = vmul.f32 %v290, %v734
        %v815 = vmul.f32 %v291, %v734
        %v816 = vmul.f32 %v292, %v734
        %v817 = vmul.f32 %v293, %v734
        %v818 = vmul.f32 %v294, %v734
        %v819 = vmul.f32 %v295, %v734
        %v820 = vmul.f32 %v296, %v734
        %v821 = vmul.f32 %v297, %v734
        %v822 = vmul.f32 %v298, %v734
        %v823 = vmul.f32 %v299, %v734
        %v824 = vmul.f32 %v300, %v734
        %v825 = vmul.f32 %v301, %v734
        %v826 = vmul.f32 %v302, %v734
        %v827 = vmul.f32 %v303, %v734
        %v828 = vmul.f32 %v304, %v734
        %v829 = vmul.f32 %v305, %v734
        %v830 = vmul.f32 %v306, %v734
        %v831 = vmul.f32 %v307, %v734
        %v832 = vmul.f32 %v308, %v734
        %v833 = vmul.f32 %v309, %v734
        %v834 = vmul.f32 %v310, %v734
        %v835 = vmul.f32 %v311, %v734
        %v836 = vmul.f32 %v312, %v734
        %v837 = vmul.f32 %v313, %v734
        %v838 = vmul.f32 %v314, %v734
        %v839 = vmul.f32 %v315, %v734
        %v840 = vmul.f32 %v316, %v734
        %v841 = vmul.f32 %v317, %v734
        %v842 = vmul.f32 %v318, %v734
        %v843 = vmul.f32 %v319, %v734
        %v844 = vmul.f32 %v320, %v734
        %v845 = vmul.f32 %v321, %v734
        %v846 = vmul.f32 %v322, %v734
        %v847 = vmul.f32 %v323, %v734
        %v848 = vmul.f32 %v324, %v734
        %v849 = vmul.f32 %v325, %v734
        %v850 = vmul.f32 %v326, %v734
        %v851 = vmul.f32 %v327, %v734
        %v852 = vmul.f32 %v328, %v734
        %v853 = vmul.f32 %v329, %v734
        %v854 = vmul.f32 %v330, %v734
        %v855 = vmul.f32 %v331, %v734
        %v856 = vmul.f32 %v332, %v734
        %v857 = vmul.f32 %v333, %v734
        %v858 = vmul.f32 %v334, %v734
        %v859 = vmul.f32 %v335, %v734
        %v860 = vmul.f32 %v336, %v734
        %v861 = vmul.f32 %v337, %v734
        %v862 = vmul.f32 %v338, %v734
        %v863 = vmul.f32 %v339, %v734
        %v864 = vmul.f32 %v340, %v734
        %v865 = vmul.f32 %v341, %v734
        %v866 = vmul.f32 %v342, %v734
        %v867 = vmul.f32 %v343, %v734
        %v868 = vmul.f32 %v344, %v734
        %v869 = vmul.f32 %v345, %v734
        %v870 = vmul.f32 %v346, %v734
        %v871 = vmul.f32 %v347, %v734
        %v872 = vmul.f32 %v348, %v734
        %v873 = vmul.f32 %v349, %v734
        %v874 = vmul.f32 %v350, %v734
        %v875 = vmul.f32 %v351, %v734
        %v876 = vmul.f32 %v352, %v734
        %v877 = vmul.f32 %v353, %v734
        %v878 = vmul.f32 %v354, %v734
        %v879 = vmul.f32 %v355, %v734
        %v880 = vmul.f32 %v356, %v734
        %v881 = vmul.f32 %v357, %v734
        %v882 = vmul.f32 %v358, %v734
        %v883 = vmul.f32 %v359, %v734
        %v884 = vmul.f32 %v360, %v734
        %v885 = vmul.f32 %v361, %v734
        %v886 = vmul.f32 %v362, %v734
        %v887 = vmul.f32 %v363, %v734
        %v888 = vmul.f32 %v364, %v734
        %v889 = vmul.f32 %v365, %v734
        %v890 = vmul.f32 %v366, %v734
        %v891 = vmul.f32 %v367, %v734
        %v892 = vmul.f32 %v368, %v734
        %v893 = vmul.f32 %v369, %v734
        %v894 = vmul.f32 %v370, %v734
        %v895 = vmul.f32 %v371, %v734
        %v896 = vmul.f32 %v372, %v734
        %v897 = vmul.f32 %v373, %v734
        %v898 = vmul.f32 %v374, %v734
        %v899 = vmul.f32 %v375, %v734
        %v900 = vmul.f32 %v376, %v734
        %v901 = vmul.f32 %v377, %v734
        %v902 = vmul.f32 %v378, %v734
        %v903 = vmul.f32 %v379, %v734
        %v904 = vmul.f32 %v380, %v734
        %v905 = vmul.f32 %v381, %v734
        %v906 = vmul.f32 %v382, %v734
        %v907 = vmul.f32 %v383, %v734
        %v908 = vmul.f32 %v384, %v734
        %v909 = vmul.f32 %v385, %v734
        %v910 = vmul.f32 %v386, %v734
        %v911 = vmul.f32 %v387, %v734
        %v912 = vmul.f32 %v388, %v734
        %v913 = vmul.f32 %v389, %v734
        %v914 = vmul.f32 %v390, %v734
        %v915 = vmul.f32 %v391, %v734
        %v916 = vmul.f32 %v392, %v734
        %v917 = vmul.f32 %v393, %v734
        %v918 = vmul.f32 %v394, %v734
        %v919 = vmul.f32 %v395, %v734
        %v920 = vmul.f32 %v396, %v734
        %v921 = vmul.f32 %v397, %v734
        %v922 = vmul.f32 %v398, %v734
        %v923 = vmul.f32 %v399, %v734
        %v924 = vmul.f32 %v400, %v734
        %v925 = vmul.f32 %v401, %v734
        %v926 = vmul.f32 %v402, %v734
        %v927 = vmul.f32 %v403, %v734
        %v928 = vmul.f32 %v404, %v734
        %v929 = vmul.f32 %v405, %v734
        %v930 = vmul.f32 %v406, %v734
        %v931 = vmul.f32 %v407, %v734
        %v932 = vmul.f32 %v408, %v734
        %v933 = vmul.f32 %v409, %v734
        %v934 = vmul.f32 %v410, %v734
        %v935 = vmul.f32 %v411, %v734
        %v936 = vmul.f32 %v412, %v734
        %v937 = vmul.f32 %v413, %v734
        %v938 = vmul.f32 %v414, %v734
        %v939 = vmul.f32 %v415, %v734
        %v940 = vmul.f32 %v416, %v734
        %v941 = vmul.f32 %v417, %v734
        %v942 = vmul.f32 %v418, %v734
        %v943 = vmul.f32 %v419, %v734
        %v944 = vmul.f32 %v420, %v734
        %v945 = vmul.f32 %v421, %v734
        %v946 = vmul.f32 %v422, %v734
        %v947 = vmul.f32 %v423, %v734
        %v948 = vmul.f32 %v424, %v734
        %v949 = vmul.f32 %v425, %v734
        %v950 = vmul.f32 %v426, %v734
        %v951 = vmul.f32 %v427, %v734
        %v952 = vmul.f32 %v428, %v734
        %v953 = vmul.f32 %v429, %v734
        %v954 = vmul.f32 %v430, %v734
        %v955 = vmul.f32 %v431, %v734
        %v956 = vmul.f32 %v432, %v734
        %v957 = vmul.f32 %v433, %v734
        %v958 = vmul.f32 %v434, %v734
        %v959 = vmul.f32 %v435, %v734
        %v960 = vmul.f32 %v436, %v734
        %v961 = vmul.f32 %v437, %v734
        %v962 = vmul.f32 %v438, %v734
        %v963 = vmul.f32 %v439, %v734
        %v964 = vmul.f32 %v440, %v734
        %v965 = vmul.f32 %v441, %v734
        %v966 = vmul.f32 %v442, %v734
        %v967 = vmul.f32 %v443, %v734
        %v968 = vmul.f32 %v444, %v734
        %v969 = vmul.f32 %v445, %v734
        %v970 = vmul.f32 %v446, %v734
        %v971 = vmul.f32 %v447, %v734
        %v972 = vmul.f32 %v448, %v734
        %v973 = vmul.f32 %v449, %v734
        %v974 = vmul.f32 %v450, %v734
        %v975 = vmul.f32 %v451, %v734
        %v976 = vmul.f32 %v452, %v734
        %v977 = vmul.f32 %v453, %v734
        %v978 = vmul.f32 %v454, %v734
        %v979 = vmul.f32 %v455, %v734
        %v980 = vmul.f32 %v456, %v734
        %v981 = vmul.f32 %v457, %v734
        %v982 = vmul.f32 %v458, %v734
        %v983 = vmul.f32 %v459, %v734
        %v984 = vmul.f32 %v460, %v734
        %v985 = vmul.f32 %v461, %v734
        %v986 = vmul.f32 %v462, %v734
        %v987 = vmul.f32 %v463, %v734
        %v988 = vmul.f32 %v464, %v734
        %v989 = vmul.f32 %v465, %v734
        %v990 = vmul.f32 %v466, %v734
        %v991 = vmul.f32 %v467, %v734
        %v992 = vmul.f32 %v468, %v734
        %v993 = vmul.f32 %v469, %v734
        %v994 = vmul.f32 %v470, %v734
        %v995 = vmul.f32 %v471, %v734
        %v996 = vmul.f32 %v472, %v734
        %v997 = vmul.f32 %v473, %v734
        %v998 = vmul.f32 %v474, %v734
        %v999 = vmul.f32 %v475, %v734
        %v1000 = vmul.f32 %v476, %v734
        %v1001 = vmul.f32 %v477, %v734
        %v1002 = vmul.f32 %v478, %v734
        %v1003 = vmul.f32 %v479, %v734
        %v1004 = vmul.f32 %v480, %v734
        %v1005 = vmul.f32 %v481, %v734
        %v1006 = vmul.f32 %v482, %v734
        %v1007 = vmul.f32 %v483, %v734
        %v1008 = vmul.f32 %v484, %v734
        %v1009 = vmul.f32 %v485, %v734
        %v1010 = vmul.f32 %v486, %v734
        %v1011 = vmul.f32 %v487, %v734
        %v1012 = vmul.f32 %v488, %v734
        %v1013 = vmul.f32 %v489, %v734
        %v1014 = vmul.f32 %v490, %v734
        %v1015 = vmul.f32 %v491, %v734
        %v1016 = vmul.f32 %v492, %v734
        %v1017 = vmul.f32 %v493, %v734
        %v1018 = vmul.f32 %v494, %v734
        %v1019 = vmul.f32 %v495, %v734
        %v1020 = vmul.f32 %v496, %v734
        %v1021 = vmul.f32 %v497, %v734
        %v1022 = vmul.f32 %v498, %v734
        %v1023 = vmul.f32 %v499, %v734
        %v1024 = vmul.f32 %v500, %v734
        %v1025 = vmul.f32 %v501, %v734
        %v1026 = vmul.f32 %v502, %v734
        %v1027 = vmul.f32 %v503, %v734
        %v1028 = vmul.f32 %v504, %v734
        %v1029 = vmul.f32 %v505, %v734
        %v1030 = vmul.f32 %v506, %v734
        %v1031 = vmul.f32 %v507, %v734
        %v1032 = vmul.f32 %v508, %v734
        %v1033 = vmul.f32 %v509, %v734
        %v1034 = vmul.f32 %v510, %v734
        %v1035 = vmul.f32 %v511, %v734
        %v1036 = vmul.f32 %v512, %v734
        %v1037 = vmul.f32 %v513, %v734
        %v1038 = vmul.f32 %v514, %v734
        %v1039 = vmul.f32 %v515, %v734
        %v1040 = vmul.f32 %v516, %v734
        %v1041 = vmul.f32 %v517, %v734
        %v1042 = vmul.f32 %v518, %v734
        %v1043 = vmul.f32 %v519, %v734
        %v1044 = vmul.f32 %v520, %v734
        %v1045 = vmul.f32 %v521, %v734
        %v1046 = vmul.f32 %v522, %v734
        %v1047 = vmul.f32 %v523, %v734
        %v1048 = vmul.f32 %v524, %v734
        %v1049 = vmul.f32 %v525, %v734
        %v1050 = vmul.f32 %v526, %v734
        %v1051 = vmul.f32 %v527, %v734
        %v1052 = vmul.f32 %v528, %v734
        %v1053 = vmul.f32 %v529, %v734
        %v1054 = vmul.f32 %v530, %v734
        %v1055 = vmul.f32 %v531, %v734
        %v1056 = vmul.f32 %v532, %v734
        %v1057 = vmul.f32 %v533, %v734
        %v1058 = vmul.f32 %v534, %v734
        %v1059 = vmul.f32 %v535, %v734
        %v1060 = vmul.f32 %v536, %v734
        %v1061 = vmul.f32 %v537, %v734
        %v1062 = vmul.f32 %v538, %v734
        %v1063 = vmul.f32 %v539, %v734
        %v1064 = vmul.f32 %v540, %v734
        %v1065 = vmul.f32 %v541, %v734
        %v1066 = vmul.f32 %v542, %v734
        %v1067 = vmul.f32 %v543, %v734
        %v1068 = vmul.f32 %v544, %v734
        %v1069 = vmul.f32 %v545, %v734
        %v1070 = vmul.f32 %v546, %v734
        %v1071 = vmul.f32 %v547, %v734
        %v1072 = vmul.f32 %v548, %v734
        %v1073 = vmul.f32 %v549, %v734
        %v1074 = vmul.f32 %v550, %v734
        %v1075 = vmul.f32 %v551, %v734
        %v1076 = vmul.f32 %v552, %v734
        %v1077 = vmul.f32 %v553, %v734
        %v1078 = vmul.f32 %v554, %v734
        %v1079 = vmul.f32 %v555, %v734
        %v1080 = vmul.f32 %v556, %v734
        %v1081 = vmul.f32 %v557, %v734
        %v1082 = vmul.f32 %v558, %v734
        %v1083 = vmul.f32 %v559, %v734
        %v1084 = vmul.f32 %v560, %v734
        %v1085 = vmul.f32 %v561, %v734
        %v1086 = vmul.f32 %v562, %v734
        %v1087 = vmul.f32 %v563, %v734
        %v1088 = vmul.f32 %v564, %v734
        %v1089 = vmul.f32 %v565, %v734
        %v1090 = vmul.f32 %v566, %v734
        %v1091 = vmul.f32 %v567, %v734
        %v1092 = vmul.f32 %v568, %v734
        %v1093 = vmul.f32 %v569, %v734
        %v1094 = vmul.f32 %v570, %v734
        %v1095 = vmul.f32 %v571, %v734
        %v1096 = vmul.f32 %v572, %v734
        %v1097 = vmul.f32 %v573, %v734
        %v1098 = vmul.f32 %v574, %v734
        %v1099 = vmul.f32 %v575, %v734
        %v1100 = vmul.f32 %v576, %v734
        %v1101 = vmul.f32 %v577, %v734
        %v1102 = vmul.f32 %v578, %v734
        %v1103 = vmul.f32 %v579, %v734
        %v1104 = vmul.f32 %v580, %v734
        %v1105 = vmul.f32 %v581, %v734
        %v1106 = vmul.f32 %v582, %v734
        %v1107 = vmul.f32 %v583, %v734
        %v1108 = vmul.f32 %v584, %v734
        %v1109 = vmul.f32 %v585, %v734
        %v1110 = vmul.f32 %v586, %v734
        %v1111 = vmul.f32 %v587, %v734
        %v1112 = vmul.f32 %v588, %v734
        %v1113 = vmul.f32 %v589, %v734
        %v1114 = vmul.f32 %v590, %v734
        %v1115 = vmul.f32 %v591, %v734
        %v1116 = vmul.f32 %v592, %v734
        %v1117 = vmul.f32 %v593, %v734
        %v1118 = vmul.f32 %v594, %v734
        %v1119 = vmul.f32 %v595, %v734
        %v1120 = vmul.f32 %v596, %v734
        %v1121 = vmul.f32 %v597, %v734
        %v1122 = vmul.f32 %v598, %v734
        %v1123 = vmul.f32 %v599, %v734
        %v1124 = vmul.f32 %v600, %v734
        %v1125 = vmul.f32 %v601, %v734
        %v1126 = vmul.f32 %v602, %v734
        %v1127 = vmul.f32 %v603, %v734
        %v1128 = vmul.f32 %v604, %v734
        %v1129 = vmul.f32 %v605, %v734
        %v1130 = vmul.f32 %v606, %v734
        %v1131 = vmul.f32 %v607, %v734
        %v1132 = vmul.f32 %v608, %v734
        %v1133 = vmul.f32 %v609, %v734
        %v1134 = vmul.f32 %v610, %v734
        %v1135 = vmul.f32 %v611, %v734
        %v1136 = vmul.f32 %v612, %v734
        %v1137 = vmul.f32 %v613, %v734
        %v1138 = vmul.f32 %v614, %v734
        %v1139 = vmul.f32 %v615, %v734
        %v1140 = vmul.f32 %v616, %v734
        %v1141 = vmul.f32 %v617, %v734
        %v1142 = vmul.f32 %v618, %v734
        %v1143 = vmul.f32 %v619, %v734
        %v1144 = vmul.f32 %v620, %v734
        %v1145 = vmul.f32 %v621, %v734
        %v1146 = vmul.f32 %v622, %v734
        %v1147 = vmul.f32 %v623, %v734
        %v1148 = vmul.f32 %v624, %v734
        %v1149 = vmul.f32 %v625, %v734
        %v1150 = vmul.f32 %v626, %v734
        %v1151 = vmul.f32 %v627, %v734
        %v1152 = vmul.f32 %v628, %v734
        %v1153 = vmul.f32 %v629, %v734
        %v1154 = vmul.f32 %v630, %v734
        %v1155 = vmul.f32 %v631, %v734
        %v1156 = vmul.f32 %v632, %v734
        %v1157 = vmul.f32 %v633, %v734
        %v1158 = vmul.f32 %v634, %v734
        %v1159 = vmul.f32 %v635, %v734
        %v1160 = vmul.f32 %v636, %v734
        %v1161 = vmul.f32 %v637, %v734
        %v1162 = vmul.f32 %v638, %v734
        %v1163 = vmul.f32 %v639, %v734
        %v1164 = vmul.f32 %v640, %v734
        %v1165 = vmul.f32 %v641, %v734
        %v1166 = vmul.f32 %v642, %v734
        %v1167 = vmul.f32 %v643, %v734
        %v1168 = vmul.f32 %v644, %v734
        %v1169 = vmul.f32 %v645, %v734
        %v1170 = vmul.f32 %v646, %v734
        %v1171 = vmul.f32 %v647, %v734
        %v1172 = vmul.f32 %v648, %v734
        %v1173 = vmul.f32 %v649, %v734
        %v1174 = vmul.f32 %v650, %v734
        %v1175 = vmul.f32 %v651, %v734
        %v1176 = vmul.f32 %v652, %v734
        %v1177 = vmul.f32 %v653, %v734
        %v1178 = vmul.f32 %v654, %v734
        %v1179 = vmul.f32 %v655, %v734
        %v1180 = vmul.f32 %v656, %v734
        %v1181 = vmul.f32 %v657, %v734
        %v1182 = vmul.f32 %v658, %v734
        %v1183 = vmul.f32 %v659, %v734
        %v1184 = vmul.f32 %v660, %v734
        %v1185 = vmul.f32 %v661, %v734
        %v1186 = vmul.f32 %v662, %v734
        %v1187 = vmul.f32 %v663, %v734
        %v1188 = vmul.f32 %v664, %v734
        %v1189 = vmul.f32 %v665, %v734
        %v1190 = vmul.f32 %v666, %v734
        %v1191 = vmul.f32 %v667, %v734
        %v1192 = vmul.f32 %v668, %v734
        %v1193 = vmul.f32 %v669, %v734
        %v1194 = vmul.f32 %v670, %v734
        %v1195 = vmul.f32 %v671, %v734
        %v1196 = vmul.f32 %v672, %v734
        %v1197 = vmul.f32 %v673, %v734
        %v1198 = vmul.f32 %v674, %v734
        %v1199 = vmul.f32 %v675, %v734
        %v1200 = vmul.f32 %v676, %v734
        %v1201 = vmul.f32 %v677, %v734
        %v1202 = vmul.f32 %v678, %v734
        %v1203 = vmul.f32 %v679, %v734
        %v1204 = vmul.f32 %v680, %v734
        %v1205 = vmul.f32 %v681, %v734
        %v1206 = vmul.f32 %v682, %v734
        %v1207 = vmul.f32 %v683, %v734
        %v1208 = vmul.f32 %v684, %v734
        %v1209 = vmul.f32 %v685, %v734
        %v1210 = vmul.f32 %v686, %v734
        %v1211 = vmul.f32 %v687, %v734
        %v1212 = vmul.f32 %v688, %v734
        %v1213 = vmul.f32 %v689, %v734
        %v1214 = vmul.f32 %v690, %v734
        %v1215 = vmul.f32 %v691, %v734
        %v1216 = vmul.f32 %v692, %v734
        %v1217 = vmul.f32 %v693, %v734
        %v1218 = vmul.f32 %v694, %v734
        %v1219 = vmul.f32 %v695, %v734
        %v1220 = vmul.f32 %v696, %v734
        %v1221 = vmul.f32 %v697, %v734
        %v1222 = vmul.f32 %v698, %v734
        %v1223 = vmul.f32 %v699, %v734
        %v1224 = vmul.f32 %v700, %v734
        %v1225 = vmul.f32 %v701, %v734
        %v1226 = vmul.f32 %v702, %v734
        %v1227 = vmul.f32 %v703, %v734
        %v1228 = vmul.f32 %v704, %v734
        %v1229 = vmul.f32 %v705, %v734
        %v1230 = vmul.f32 %v706, %v734
        %v1231 = vmul.f32 %v707, %v734
        %v1232 = vmul.f32 %v708, %v734
        %v1233 = vmul.f32 %v709, %v734
        %v1234 = vmul.f32 %v710, %v734
        %v1235 = vmul.f32 %v711, %v734
        %v1236 = vmul.f32 %v712, %v734
        %v1237 = vmul.f32 %v713, %v734
        %v1238 = vmul.f32 %v714, %v734
        %v1239 = vmul.f32 %v715, %v734
        %v1240 = vmul.f32 %v716, %v734
        %v1241 = vmul.f32 %v717, %v734
        %v1242 = vmul.f32 %v718, %v734
        %v1243 = vmul.f32 %v719, %v734
        %v1244 = vmul.f32 %v720, %v734
        %v1245 = vmul.f32 %v721, %v734
        %v1246 = vmul.f32 %v722, %v734
        %v1247 = vmul.f32 %v723, %v734
        %1248 = vst [vmem:[%s196] sm:$0xff] %v736
        %1249 = vst [vmem:[%s196 + $0x8] sm:$0xff] %v737
        %1250 = vst [vmem:[%s196 + $0x10] sm:$0xff] %v738
        %1251 = vst [vmem:[%s196 + $0x18] sm:$0xff] %v739
        %1252 = vst [vmem:[%s196 + $0x20] sm:$0xff] %v740
        %1253 = vst [vmem:[%s196 + $0x28] sm:$0xff] %v741
        %1254 = vst [vmem:[%s196 + $0x30] sm:$0xff] %v742
        %1255 = vst [vmem:[%s196 + $0x38] sm:$0xff] %v743
        %1256 = vst [vmem:[%s196 + $0x40] sm:$0xff] %v744
        %1257 = vst [vmem:[%s196 + $0x48] sm:$0xff] %v745
        %1258 = vst [vmem:[%s196 + $0x50] sm:$0xff] %v746
        %1259 = vst [vmem:[%s196 + $0x58] sm:$0xff] %v747
        %1260 = vst [vmem:[%s196 + $0x60] sm:$0xff] %v748
        %1261 = vst [vmem:[%s196 + $0x68] sm:$0xff] %v749
        %1262 = vst [vmem:[%s196 + $0x70] sm:$0xff] %v750
        %1263 = vst [vmem:[%s196 + $0x78] sm:$0xff] %v751
        %1264 = vst [vmem:[%s196 + $0x80] sm:$0xff] %v752
        %1265 = vst [vmem:[%s196 + $0x88] sm:$0xff] %v753
        %1266 = vst [vmem:[%s196 + $0x90] sm:$0xff] %v754
        %1267 = vst [vmem:[%s196 + $0x98] sm:$0xff] %v755
        %1268 = vst [vmem:[%s196 + $0xa0] sm:$0xff] %v756
        %1269 = vst [vmem:[%s196 + $0xa8] sm:$0xff] %v757
        %1270 = vst [vmem:[%s196 + $0xb0] sm:$0xff] %v758
        %1271 = vst [vmem:[%s196 + $0xb8] sm:$0xff] %v759
        %1272 = vst [vmem:[%s196 + $0xc0] sm:$0xff] %v760
        %1273 = vst [vmem:[%s196 + $0xc8] sm:$0xff] %v761
        %1274 = vst [vmem:[%s196 + $0xd0] sm:$0xff] %v762
        %1275 = vst [vmem:[%s196 + $0xd8] sm:$0xff] %v763
        %1276 = vst [vmem:[%s196 + $0xe0] sm:$0xff] %v764
        %1277 = vst [vmem:[%s196 + $0xe8] sm:$0xff] %v765
        %1278 = vst [vmem:[%s196 + $0xf0] sm:$0xff] %v766
        %1279 = vst [vmem:[%s196 + $0xf8] sm:$0xff] %v767
        %1280 = vst [vmem:[%s196 + $0x100] sm:$0xff] %v768
        %1281 = vst [vmem:[%s196 + $0x108] sm:$0xff] %v769
        %1282 = vst [vmem:[%s196 + $0x110] sm:$0xff] %v770
        %1283 = vst [vmem:[%s196 + $0x118] sm:$0xff] %v771
        %1284 = vst [vmem:[%s196 + $0x120] sm:$0xff] %v772
        %1285 = vst [vmem:[%s196 + $0x128] sm:$0xff] %v773
        %1286 = vst [vmem:[%s196 + $0x130] sm:$0xff] %v774
        %1287 = vst [vmem:[%s196 + $0x138] sm:$0xff] %v775
        %1288 = vst [vmem:[%s196 + $0x140] sm:$0xff] %v776
        %1289 = vst [vmem:[%s196 + $0x148] sm:$0xff] %v777
        %1290 = vst [vmem:[%s196 + $0x150] sm:$0xff] %v778
        %1291 = vst [vmem:[%s196 + $0x158] sm:$0xff] %v779
        %1292 = vst [vmem:[%s196 + $0x160] sm:$0xff] %v780
        %1293 = vst [vmem:[%s196 + $0x168] sm:$0xff] %v781
        %1294 = vst [vmem:[%s196 + $0x170] sm:$0xff] %v782
        %1295 = vst [vmem:[%s196 + $0x178] sm:$0xff] %v783
        %1296 = vst [vmem:[%s196 + $0x180] sm:$0xff] %v784
        %1297 = vst [vmem:[%s196 + $0x188] sm:$0xff] %v785
        %1298 = vst [vmem:[%s196 + $0x190] sm:$0xff] %v786
        %1299 = vst [vmem:[%s196 + $0x198] sm:$0xff] %v787
        %1300 = vst [vmem:[%s196 + $0x1a0] sm:$0xff] %v788
        %1301 = vst [vmem:[%s196 + $0x1a8] sm:$0xff] %v789
        %1302 = vst [vmem:[%s196 + $0x1b0] sm:$0xff] %v790
        %1303 = vst [vmem:[%s196 + $0x1b8] sm:$0xff] %v791
        %1304 = vst [vmem:[%s196 + $0x1c0] sm:$0xff] %v792
        %1305 = vst [vmem:[%s196 + $0x1c8] sm:$0xff] %v793
        %1306 = vst [vmem:[%s196 + $0x1d0] sm:$0xff] %v794
        %1307 = vst [vmem:[%s196 + $0x1d8] sm:$0xff] %v795
        %1308 = vst [vmem:[%s196 + $0x1e0] sm:$0xff] %v796
        %1309 = vst [vmem:[%s196 + $0x1e8] sm:$0xff] %v797
        %1310 = vst [vmem:[%s196 + $0x1f0] sm:$0xff] %v798
        %1311 = vst [vmem:[%s196 + $0x1f8] sm:$0xff] %v799
        %1312 = vst [vmem:[%s196 + $0x200] sm:$0xff] %v800
        %1313 = vst [vmem:[%s196 + $0x208] sm:$0xff] %v801
        %1314 = vst [vmem:[%s196 + $0x210] sm:$0xff] %v802
        %1315 = vst [vmem:[%s196 + $0x218] sm:$0xff] %v803
        %1316 = vst [vmem:[%s196 + $0x220] sm:$0xff] %v804
        %1317 = vst [vmem:[%s196 + $0x228] sm:$0xff] %v805
        %1318 = vst [vmem:[%s196 + $0x230] sm:$0xff] %v806
        %1319 = vst [vmem:[%s196 + $0x238] sm:$0xff] %v807
        %1320 = vst [vmem:[%s196 + $0x240] sm:$0xff] %v808
        %1321 = vst [vmem:[%s196 + $0x248] sm:$0xff] %v809
        %1322 = vst [vmem:[%s196 + $0x250] sm:$0xff] %v810
        %1323 = vst [vmem:[%s196 + $0x258] sm:$0xff] %v811
        %1324 = vst [vmem:[%s196 + $0x260] sm:$0xff] %v812
        %1325 = vst [vmem:[%s196 + $0x268] sm:$0xff] %v813
        %1326 = vst [vmem:[%s196 + $0x270] sm:$0xff] %v814
        %1327 = vst [vmem:[%s196 + $0x278] sm:$0xff] %v815
        %1328 = vst [vmem:[%s196 + $0x280] sm:$0xff] %v816
        %1329 = vst [vmem:[%s196 + $0x288] sm:$0xff] %v817
        %1330 = vst [vmem:[%s196 + $0x290] sm:$0xff] %v818
        %1331 = vst [vmem:[%s196 + $0x298] sm:$0xff] %v819
        %1332 = vst [vmem:[%s196 + $0x2a0] sm:$0xff] %v820
        %1333 = vst [vmem:[%s196 + $0x2a8] sm:$0xff] %v821
        %1334 = vst [vmem:[%s196 + $0x2b0] sm:$0xff] %v822
        %1335 = vst [vmem:[%s196 + $0x2b8] sm:$0xff] %v823
        %1336 = vst [vmem:[%s196 + $0x2c0] sm:$0xff] %v824
        %1337 = vst [vmem:[%s196 + $0x2c8] sm:$0xff] %v825
        %1338 = vst [vmem:[%s196 + $0x2d0] sm:$0xff] %v826
        %1339 = vst [vmem:[%s196 + $0x2d8] sm:$0xff] %v827
        %1340 = vst [vmem:[%s196 + $0x2e0] sm:$0xff] %v828
        %1341 = vst [vmem:[%s196 + $0x2e8] sm:$0xff] %v829
        %1342 = vst [vmem:[%s196 + $0x2f0] sm:$0xff] %v830
        %1343 = vst [vmem:[%s196 + $0x2f8] sm:$0xff] %v831
        %1344 = vst [vmem:[%s196 + $0x300] sm:$0xff] %v832
        %1345 = vst [vmem:[%s196 + $0x308] sm:$0xff] %v833
        %1346 = vst [vmem:[%s196 + $0x310] sm:$0xff] %v834
        %1347 = vst [vmem:[%s196 + $0x318] sm:$0xff] %v835
        %1348 = vst [vmem:[%s196 + $0x320] sm:$0xff] %v836
        %1349 = vst [vmem:[%s196 + $0x328] sm:$0xff] %v837
        %1350 = vst [vmem:[%s196 + $0x330] sm:$0xff] %v838
        %1351 = vst [vmem:[%s196 + $0x338] sm:$0xff] %v839
        %1352 = vst [vmem:[%s196 + $0x340] sm:$0xff] %v840
        %1353 = vst [vmem:[%s196 + $0x348] sm:$0xff] %v841
        %1354 = vst [vmem:[%s196 + $0x350] sm:$0xff] %v842
        %1355 = vst [vmem:[%s196 + $0x358] sm:$0xff] %v843
        %1356 = vst [vmem:[%s196 + $0x360] sm:$0xff] %v844
        %1357 = vst [vmem:[%s196 + $0x368] sm:$0xff] %v845
        %1358 = vst [vmem:[%s196 + $0x370] sm:$0xff] %v846
        %1359 = vst [vmem:[%s196 + $0x378] sm:$0xff] %v847
        %1360 = vst [vmem:[%s196 + $0x380] sm:$0xff] %v848
        %1361 = vst [vmem:[%s196 + $0x388] sm:$0xff] %v849
        %1362 = vst [vmem:[%s196 + $0x390] sm:$0xff] %v850
        %1363 = vst [vmem:[%s196 + $0x398] sm:$0xff] %v851
        %1364 = vst [vmem:[%s196 + $0x3a0] sm:$0xff] %v852
        %1365 = vst [vmem:[%s196 + $0x3a8] sm:$0xff] %v853
        %1366 = vst [vmem:[%s196 + $0x3b0] sm:$0xff] %v854
        %1367 = vst [vmem:[%s196 + $0x3b8] sm:$0xff] %v855
        %1368 = vst [vmem:[%s196 + $0x3c0] sm:$0xff] %v856
        %1369 = vst [vmem:[%s196 + $0x3c8] sm:$0xff] %v857
        %1370 = vst [vmem:[%s196 + $0x3d0] sm:$0xff] %v858
        %1371 = vst [vmem:[%s196 + $0x3d8] sm:$0xff] %v859
        %1372 = vst [vmem:[%s196 + $0x3e0] sm:$0xff] %v860
        %1373 = vst [vmem:[%s196 + $0x3e8] sm:$0xff] %v861
        %1374 = vst [vmem:[%s196 + $0x3f0] sm:$0xff] %v862
        %1375 = vst [vmem:[%s196 + $0x3f8] sm:$0xff] %v863
        %1376 = vst [vmem:[%s196 + $0x400] sm:$0xff] %v864
        %1377 = vst [vmem:[%s196 + $0x408] sm:$0xff] %v865
        %1378 = vst [vmem:[%s196 + $0x410] sm:$0xff] %v866
        %1379 = vst [vmem:[%s196 + $0x418] sm:$0xff] %v867
        %1380 = vst [vmem:[%s196 + $0x420] sm:$0xff] %v868
        %1381 = vst [vmem:[%s196 + $0x428] sm:$0xff] %v869
        %1382 = vst [vmem:[%s196 + $0x430] sm:$0xff] %v870
        %1383 = vst [vmem:[%s196 + $0x438] sm:$0xff] %v871
        %1384 = vst [vmem:[%s196 + $0x440] sm:$0xff] %v872
        %1385 = vst [vmem:[%s196 + $0x448] sm:$0xff] %v873
        %1386 = vst [vmem:[%s196 + $0x450] sm:$0xff] %v874
        %1387 = vst [vmem:[%s196 + $0x458] sm:$0xff] %v875
        %1388 = vst [vmem:[%s196 + $0x460] sm:$0xff] %v876
        %1389 = vst [vmem:[%s196 + $0x468] sm:$0xff] %v877
        %1390 = vst [vmem:[%s196 + $0x470] sm:$0xff] %v878
        %1391 = vst [vmem:[%s196 + $0x478] sm:$0xff] %v879
        %1392 = vst [vmem:[%s196 + $0x480] sm:$0xff] %v880
        %1393 = vst [vmem:[%s196 + $0x488] sm:$0xff] %v881
        %1394 = vst [vmem:[%s196 + $0x490] sm:$0xff] %v882
        %1395 = vst [vmem:[%s196 + $0x498] sm:$0xff] %v883
        %1396 = vst [vmem:[%s196 + $0x4a0] sm:$0xff] %v884
        %1397 = vst [vmem:[%s196 + $0x4a8] sm:$0xff] %v885
        %1398 = vst [vmem:[%s196 + $0x4b0] sm:$0xff] %v886
        %1399 = vst [vmem:[%s196 + $0x4b8] sm:$0xff] %v887
        %1400 = vst [vmem:[%s196 + $0x4c0] sm:$0xff] %v888
        %1401 = vst [vmem:[%s196 + $0x4c8] sm:$0xff] %v889
        %1402 = vst [vmem:[%s196 + $0x4d0] sm:$0xff] %v890
        %1403 = vst [vmem:[%s196 + $0x4d8] sm:$0xff] %v891
        %1404 = vst [vmem:[%s196 + $0x4e0] sm:$0xff] %v892
        %1405 = vst [vmem:[%s196 + $0x4e8] sm:$0xff] %v893
        %1406 = vst [vmem:[%s196 + $0x4f0] sm:$0xff] %v894
        %1407 = vst [vmem:[%s196 + $0x4f8] sm:$0xff] %v895
        %1408 = vst [vmem:[%s196 + $0x500] sm:$0xff] %v896
        %1409 = vst [vmem:[%s196 + $0x508] sm:$0xff] %v897
        %1410 = vst [vmem:[%s196 + $0x510] sm:$0xff] %v898
        %1411 = vst [vmem:[%s196 + $0x518] sm:$0xff] %v899
        %1412 = vst [vmem:[%s196 + $0x520] sm:$0xff] %v900
        %1413 = vst [vmem:[%s196 + $0x528] sm:$0xff] %v901
        %1414 = vst [vmem:[%s196 + $0x530] sm:$0xff] %v902
        %1415 = vst [vmem:[%s196 + $0x538] sm:$0xff] %v903
        %1416 = vst [vmem:[%s196 + $0x540] sm:$0xff] %v904
        %1417 = vst [vmem:[%s196 + $0x548] sm:$0xff] %v905
        %1418 = vst [vmem:[%s196 + $0x550] sm:$0xff] %v906
        %1419 = vst [vmem:[%s196 + $0x558] sm:$0xff] %v907
        %1420 = vst [vmem:[%s196 + $0x560] sm:$0xff] %v908
        %1421 = vst [vmem:[%s196 + $0x568] sm:$0xff] %v909
        %1422 = vst [vmem:[%s196 + $0x570] sm:$0xff] %v910
        %1423 = vst [vmem:[%s196 + $0x578] sm:$0xff] %v911
        %1424 = vst [vmem:[%s196 + $0x580] sm:$0xff] %v912
        %1425 = vst [vmem:[%s196 + $0x588] sm:$0xff] %v913
        %1426 = vst [vmem:[%s196 + $0x590] sm:$0xff] %v914
        %1427 = vst [vmem:[%s196 + $0x598] sm:$0xff] %v915
        %1428 = vst [vmem:[%s196 + $0x5a0] sm:$0xff] %v916
        %1429 = vst [vmem:[%s196 + $0x5a8] sm:$0xff] %v917
        %1430 = vst [vmem:[%s196 + $0x5b0] sm:$0xff] %v918
        %1431 = vst [vmem:[%s196 + $0x5b8] sm:$0xff] %v919
        %1432 = vst [vmem:[%s196 + $0x5c0] sm:$0xff] %v920
        %1433 = vst [vmem:[%s196 + $0x5c8] sm:$0xff] %v921
        %1434 = vst [vmem:[%s196 + $0x5d0] sm:$0xff] %v922
        %1435 = vst [vmem:[%s196 + $0x5d8] sm:$0xff] %v923
        %1436 = vst [vmem:[%s196 + $0x5e0] sm:$0xff] %v924
        %1437 = vst [vmem:[%s196 + $0x5e8] sm:$0xff] %v925
        %1438 = vst [vmem:[%s196 + $0x5f0] sm:$0xff] %v926
        %1439 = vst [vmem:[%s196 + $0x5f8] sm:$0xff] %v927
        %1440 = vst [vmem:[%s196 + $0x600] sm:$0xff] %v928
        %1441 = vst [vmem:[%s196 + $0x608] sm:$0xff] %v929
        %1442 = vst [vmem:[%s196 + $0x610] sm:$0xff] %v930
        %1443 = vst [vmem:[%s196 + $0x618] sm:$0xff] %v931
        %1444 = vst [vmem:[%s196 + $0x620] sm:$0xff] %v932
        %1445 = vst [vmem:[%s196 + $0x628] sm:$0xff] %v933
        %1446 = vst [vmem:[%s196 + $0x630] sm:$0xff] %v934
        %1447 = vst [vmem:[%s196 + $0x638] sm:$0xff] %v935
        %1448 = vst [vmem:[%s196 + $0x640] sm:$0xff] %v936
        %1449 = vst [vmem:[%s196 + $0x648] sm:$0xff] %v937
        %1450 = vst [vmem:[%s196 + $0x650] sm:$0xff] %v938
        %1451 = vst [vmem:[%s196 + $0x658] sm:$0xff] %v939
        %1452 = vst [vmem:[%s196 + $0x660] sm:$0xff] %v940
        %1453 = vst [vmem:[%s196 + $0x668] sm:$0xff] %v941
        %1454 = vst [vmem:[%s196 + $0x670] sm:$0xff] %v942
        %1455 = vst [vmem:[%s196 + $0x678] sm:$0xff] %v943
        %1456 = vst [vmem:[%s196 + $0x680] sm:$0xff] %v944
        %1457 = vst [vmem:[%s196 + $0x688] sm:$0xff] %v945
        %1458 = vst [vmem:[%s196 + $0x690] sm:$0xff] %v946
        %1459 = vst [vmem:[%s196 + $0x698] sm:$0xff] %v947
        %1460 = vst [vmem:[%s196 + $0x6a0] sm:$0xff] %v948
        %1461 = vst [vmem:[%s196 + $0x6a8] sm:$0xff] %v949
        %1462 = vst [vmem:[%s196 + $0x6b0] sm:$0xff] %v950
        %1463 = vst [vmem:[%s196 + $0x6b8] sm:$0xff] %v951
        %1464 = vst [vmem:[%s196 + $0x6c0] sm:$0xff] %v952
        %1465 = vst [vmem:[%s196 + $0x6c8] sm:$0xff] %v953
        %1466 = vst [vmem:[%s196 + $0x6d0] sm:$0xff] %v954
        %1467 = vst [vmem:[%s196 + $0x6d8] sm:$0xff] %v955
        %1468 = vst [vmem:[%s196 + $0x6e0] sm:$0xff] %v956
        %1469 = vst [vmem:[%s196 + $0x6e8] sm:$0xff] %v957
        %1470 = vst [vmem:[%s196 + $0x6f0] sm:$0xff] %v958
        %1471 = vst [vmem:[%s196 + $0x6f8] sm:$0xff] %v959
        %1472 = vst [vmem:[%s196 + $0x700] sm:$0xff] %v960
        %1473 = vst [vmem:[%s196 + $0x708] sm:$0xff] %v961
        %1474 = vst [vmem:[%s196 + $0x710] sm:$0xff] %v962
        %1475 = vst [vmem:[%s196 + $0x718] sm:$0xff] %v963
        %1476 = vst [vmem:[%s196 + $0x720] sm:$0xff] %v964
        %1477 = vst [vmem:[%s196 + $0x728] sm:$0xff] %v965
        %1478 = vst [vmem:[%s196 + $0x730] sm:$0xff] %v966
        %1479 = vst [vmem:[%s196 + $0x738] sm:$0xff] %v967
        %1480 = vst [vmem:[%s196 + $0x740] sm:$0xff] %v968
        %1481 = vst [vmem:[%s196 + $0x748] sm:$0xff] %v969
        %1482 = vst [vmem:[%s196 + $0x750] sm:$0xff] %v970
        %1483 = vst [vmem:[%s196 + $0x758] sm:$0xff] %v971
        %1484 = vst [vmem:[%s196 + $0x760] sm:$0xff] %v972
        %1485 = vst [vmem:[%s196 + $0x768] sm:$0xff] %v973
        %1486 = vst [vmem:[%s196 + $0x770] sm:$0xff] %v974
        %1487 = vst [vmem:[%s196 + $0x778] sm:$0xff] %v975
        %1488 = vst [vmem:[%s196 + $0x780] sm:$0xff] %v976
        %1489 = vst [vmem:[%s196 + $0x788] sm:$0xff] %v977
        %1490 = vst [vmem:[%s196 + $0x790] sm:$0xff] %v978
        %1491 = vst [vmem:[%s196 + $0x798] sm:$0xff] %v979
        %1492 = vst [vmem:[%s196 + $0x7a0] sm:$0xff] %v980
        %1493 = vst [vmem:[%s196 + $0x7a8] sm:$0xff] %v981
        %1494 = vst [vmem:[%s196 + $0x7b0] sm:$0xff] %v982
        %1495 = vst [vmem:[%s196 + $0x7b8] sm:$0xff] %v983
        %1496 = vst [vmem:[%s196 + $0x7c0] sm:$0xff] %v984
        %1497 = vst [vmem:[%s196 + $0x7c8] sm:$0xff] %v985
        %1498 = vst [vmem:[%s196 + $0x7d0] sm:$0xff] %v986
        %1499 = vst [vmem:[%s196 + $0x7d8] sm:$0xff] %v987
        %1500 = vst [vmem:[%s196 + $0x7e0] sm:$0xff] %v988
        %1501 = vst [vmem:[%s196 + $0x7e8] sm:$0xff] %v989
        %1502 = vst [vmem:[%s196 + $0x7f0] sm:$0xff] %v990
        %1503 = vst [vmem:[%s196 + $0x7f8] sm:$0xff] %v991
        %1504 = vst [vmem:[%s196 + $0x800] sm:$0xff] %v992
        %1505 = vst [vmem:[%s196 + $0x808] sm:$0xff] %v993
        %1506 = vst [vmem:[%s196 + $0x810] sm:$0xff] %v994
        %1507 = vst [vmem:[%s196 + $0x818] sm:$0xff] %v995
        %1508 = vst [vmem:[%s196 + $0x820] sm:$0xff] %v996
        %1509 = vst [vmem:[%s196 + $0x828] sm:$0xff] %v997
        %1510 = vst [vmem:[%s196 + $0x830] sm:$0xff] %v998
        %1511 = vst [vmem:[%s196 + $0x838] sm:$0xff] %v999
        %1512 = vst [vmem:[%s196 + $0x840] sm:$0xff] %v1000
        %1513 = vst [vmem:[%s196 + $0x848] sm:$0xff] %v1001
        %1514 = vst [vmem:[%s196 + $0x850] sm:$0xff] %v1002
        %1515 = vst [vmem:[%s196 + $0x858] sm:$0xff] %v1003
        %1516 = vst [vmem:[%s196 + $0x860] sm:$0xff] %v1004
        %1517 = vst [vmem:[%s196 + $0x868] sm:$0xff] %v1005
        %1518 = vst [vmem:[%s196 + $0x870] sm:$0xff] %v1006
        %1519 = vst [vmem:[%s196 + $0x878] sm:$0xff] %v1007
        %1520 = vst [vmem:[%s196 + $0x880] sm:$0xff] %v1008
        %1521 = vst [vmem:[%s196 + $0x888] sm:$0xff] %v1009
        %1522 = vst [vmem:[%s196 + $0x890] sm:$0xff] %v1010
        %1523 = vst [vmem:[%s196 + $0x898] sm:$0xff] %v1011
        %1524 = vst [vmem:[%s196 + $0x8a0] sm:$0xff] %v1012
        %1525 = vst [vmem:[%s196 + $0x8a8] sm:$0xff] %v1013
        %1526 = vst [vmem:[%s196 + $0x8b0] sm:$0xff] %v1014
        %1527 = vst [vmem:[%s196 + $0x8b8] sm:$0xff] %v1015
        %1528 = vst [vmem:[%s196 + $0x8c0] sm:$0xff] %v1016
        %1529 = vst [vmem:[%s196 + $0x8c8] sm:$0xff] %v1017
        %1530 = vst [vmem:[%s196 + $0x8d0] sm:$0xff] %v1018
        %1531 = vst [vmem:[%s196 + $0x8d8] sm:$0xff] %v1019
        %1532 = vst [vmem:[%s196 + $0x8e0] sm:$0xff] %v1020
        %1533 = vst [vmem:[%s196 + $0x8e8] sm:$0xff] %v1021
        %1534 = vst [vmem:[%s196 + $0x8f0] sm:$0xff] %v1022
        %1535 = vst [vmem:[%s196 + $0x8f8] sm:$0xff] %v1023
        %1536 = vst [vmem:[%s196 + $0x900] sm:$0xff] %v1024
        %1537 = vst [vmem:[%s196 + $0x908] sm:$0xff] %v1025
        %1538 = vst [vmem:[%s196 + $0x910] sm:$0xff] %v1026
        %1539 = vst [vmem:[%s196 + $0x918] sm:$0xff] %v1027
        %1540 = vst [vmem:[%s196 + $0x920] sm:$0xff] %v1028
        %1541 = vst [vmem:[%s196 + $0x928] sm:$0xff] %v1029
        %1542 = vst [vmem:[%s196 + $0x930] sm:$0xff] %v1030
        %1543 = vst [vmem:[%s196 + $0x938] sm:$0xff] %v1031
        %1544 = vst [vmem:[%s196 + $0x940] sm:$0xff] %v1032
        %1545 = vst [vmem:[%s196 + $0x948] sm:$0xff] %v1033
        %1546 = vst [vmem:[%s196 + $0x950] sm:$0xff] %v1034
        %1547 = vst [vmem:[%s196 + $0x958] sm:$0xff] %v1035
        %1548 = vst [vmem:[%s196 + $0x960] sm:$0xff] %v1036
        %1549 = vst [vmem:[%s196 + $0x968] sm:$0xff] %v1037
        %1550 = vst [vmem:[%s196 + $0x970] sm:$0xff] %v1038
        %1551 = vst [vmem:[%s196 + $0x978] sm:$0xff] %v1039
        %1552 = vst [vmem:[%s196 + $0x980] sm:$0xff] %v1040
        %1553 = vst [vmem:[%s196 + $0x988] sm:$0xff] %v1041
        %1554 = vst [vmem:[%s196 + $0x990] sm:$0xff] %v1042
        %1555 = vst [vmem:[%s196 + $0x998] sm:$0xff] %v1043
        %1556 = vst [vmem:[%s196 + $0x9a0] sm:$0xff] %v1044
        %1557 = vst [vmem:[%s196 + $0x9a8] sm:$0xff] %v1045
        %1558 = vst [vmem:[%s196 + $0x9b0] sm:$0xff] %v1046
        %1559 = vst [vmem:[%s196 + $0x9b8] sm:$0xff] %v1047
        %1560 = vst [vmem:[%s196 + $0x9c0] sm:$0xff] %v1048
        %1561 = vst [vmem:[%s196 + $0x9c8] sm:$0xff] %v1049
        %1562 = vst [vmem:[%s196 + $0x9d0] sm:$0xff] %v1050
        %1563 = vst [vmem:[%s196 + $0x9d8] sm:$0xff] %v1051
        %1564 = vst [vmem:[%s196 + $0x9e0] sm:$0xff] %v1052
        %1565 = vst [vmem:[%s196 + $0x9e8] sm:$0xff] %v1053
        %1566 = vst [vmem:[%s196 + $0x9f0] sm:$0xff] %v1054
        %1567 = vst [vmem:[%s196 + $0x9f8] sm:$0xff] %v1055
        %1568 = vst [vmem:[%s196 + $0xa00] sm:$0xff] %v1056
        %1569 = vst [vmem:[%s196 + $0xa08] sm:$0xff] %v1057
        %1570 = vst [vmem:[%s196 + $0xa10] sm:$0xff] %v1058
        %1571 = vst [vmem:[%s196 + $0xa18] sm:$0xff] %v1059
        %1572 = vst [vmem:[%s196 + $0xa20] sm:$0xff] %v1060
        %1573 = vst [vmem:[%s196 + $0xa28] sm:$0xff] %v1061
        %1574 = vst [vmem:[%s196 + $0xa30] sm:$0xff] %v1062
        %1575 = vst [vmem:[%s196 + $0xa38] sm:$0xff] %v1063
        %1576 = vst [vmem:[%s196 + $0xa40] sm:$0xff] %v1064
        %1577 = vst [vmem:[%s196 + $0xa48] sm:$0xff] %v1065
        %1578 = vst [vmem:[%s196 + $0xa50] sm:$0xff] %v1066
        %1579 = vst [vmem:[%s196 + $0xa58] sm:$0xff] %v1067
        %1580 = vst [vmem:[%s196 + $0xa60] sm:$0xff] %v1068
        %1581 = vst [vmem:[%s196 + $0xa68] sm:$0xff] %v1069
        %1582 = vst [vmem:[%s196 + $0xa70] sm:$0xff] %v1070
        %1583 = vst [vmem:[%s196 + $0xa78] sm:$0xff] %v1071
        %1584 = vst [vmem:[%s196 + $0xa80] sm:$0xff] %v1072
        %1585 = vst [vmem:[%s196 + $0xa88] sm:$0xff] %v1073
        %1586 = vst [vmem:[%s196 + $0xa90] sm:$0xff] %v1074
        %1587 = vst [vmem:[%s196 + $0xa98] sm:$0xff] %v1075
        %1588 = vst [vmem:[%s196 + $0xaa0] sm:$0xff] %v1076
        %1589 = vst [vmem:[%s196 + $0xaa8] sm:$0xff] %v1077
        %1590 = vst [vmem:[%s196 + $0xab0] sm:$0xff] %v1078
        %1591 = vst [vmem:[%s196 + $0xab8] sm:$0xff] %v1079
        %1592 = vst [vmem:[%s196 + $0xac0] sm:$0xff] %v1080
        %1593 = vst [vmem:[%s196 + $0xac8] sm:$0xff] %v1081
        %1594 = vst [vmem:[%s196 + $0xad0] sm:$0xff] %v1082
        %1595 = vst [vmem:[%s196 + $0xad8] sm:$0xff] %v1083
        %1596 = vst [vmem:[%s196 + $0xae0] sm:$0xff] %v1084
        %1597 = vst [vmem:[%s196 + $0xae8] sm:$0xff] %v1085
        %1598 = vst [vmem:[%s196 + $0xaf0] sm:$0xff] %v1086
        %1599 = vst [vmem:[%s196 + $0xaf8] sm:$0xff] %v1087
        %1600 = vst [vmem:[%s196 + $0xb00] sm:$0xff] %v1088
        %1601 = vst [vmem:[%s196 + $0xb08] sm:$0xff] %v1089
        %1602 = vst [vmem:[%s196 + $0xb10] sm:$0xff] %v1090
        %1603 = vst [vmem:[%s196 + $0xb18] sm:$0xff] %v1091
        %1604 = vst [vmem:[%s196 + $0xb20] sm:$0xff] %v1092
        %1605 = vst [vmem:[%s196 + $0xb28] sm:$0xff] %v1093
        %1606 = vst [vmem:[%s196 + $0xb30] sm:$0xff] %v1094
        %1607 = vst [vmem:[%s196 + $0xb38] sm:$0xff] %v1095
        %1608 = vst [vmem:[%s196 + $0xb40] sm:$0xff] %v1096
        %1609 = vst [vmem:[%s196 + $0xb48] sm:$0xff] %v1097
        %1610 = vst [vmem:[%s196 + $0xb50] sm:$0xff] %v1098
        %1611 = vst [vmem:[%s196 + $0xb58] sm:$0xff] %v1099
        %1612 = vst [vmem:[%s196 + $0xb60] sm:$0xff] %v1100
        %1613 = vst [vmem:[%s196 + $0xb68] sm:$0xff] %v1101
        %1614 = vst [vmem:[%s196 + $0xb70] sm:$0xff] %v1102
        %1615 = vst [vmem:[%s196 + $0xb78] sm:$0xff] %v1103
        %1616 = vst [vmem:[%s196 + $0xb80] sm:$0xff] %v1104
        %1617 = vst [vmem:[%s196 + $0xb88] sm:$0xff] %v1105
        %1618 = vst [vmem:[%s196 + $0xb90] sm:$0xff] %v1106
        %1619 = vst [vmem:[%s196 + $0xb98] sm:$0xff] %v1107
        %1620 = vst [vmem:[%s196 + $0xba0] sm:$0xff] %v1108
        %1621 = vst [vmem:[%s196 + $0xba8] sm:$0xff] %v1109
        %1622 = vst [vmem:[%s196 + $0xbb0] sm:$0xff] %v1110
        %1623 = vst [vmem:[%s196 + $0xbb8] sm:$0xff] %v1111
        %1624 = vst [vmem:[%s196 + $0xbc0] sm:$0xff] %v1112
        %1625 = vst [vmem:[%s196 + $0xbc8] sm:$0xff] %v1113
        %1626 = vst [vmem:[%s196 + $0xbd0] sm:$0xff] %v1114
        %1627 = vst [vmem:[%s196 + $0xbd8] sm:$0xff] %v1115
        %1628 = vst [vmem:[%s196 + $0xbe0] sm:$0xff] %v1116
        %1629 = vst [vmem:[%s196 + $0xbe8] sm:$0xff] %v1117
        %1630 = vst [vmem:[%s196 + $0xbf0] sm:$0xff] %v1118
        %1631 = vst [vmem:[%s196 + $0xbf8] sm:$0xff] %v1119
        %1632 = vst [vmem:[%s196 + $0xc00] sm:$0xff] %v1120
        %1633 = vst [vmem:[%s196 + $0xc08] sm:$0xff] %v1121
        %1634 = vst [vmem:[%s196 + $0xc10] sm:$0xff] %v1122
        %1635 = vst [vmem:[%s196 + $0xc18] sm:$0xff] %v1123
        %1636 = vst [vmem:[%s196 + $0xc20] sm:$0xff] %v1124
        %1637 = vst [vmem:[%s196 + $0xc28] sm:$0xff] %v1125
        %1638 = vst [vmem:[%s196 + $0xc30] sm:$0xff] %v1126
        %1639 = vst [vmem:[%s196 + $0xc38] sm:$0xff] %v1127
        %1640 = vst [vmem:[%s196 + $0xc40] sm:$0xff] %v1128
        %1641 = vst [vmem:[%s196 + $0xc48] sm:$0xff] %v1129
        %1642 = vst [vmem:[%s196 + $0xc50] sm:$0xff] %v1130
        %1643 = vst [vmem:[%s196 + $0xc58] sm:$0xff] %v1131
        %1644 = vst [vmem:[%s196 + $0xc60] sm:$0xff] %v1132
        %1645 = vst [vmem:[%s196 + $0xc68] sm:$0xff] %v1133
        %1646 = vst [vmem:[%s196 + $0xc70] sm:$0xff] %v1134
        %1647 = vst [vmem:[%s196 + $0xc78] sm:$0xff] %v1135
        %1648 = vst [vmem:[%s196 + $0xc80] sm:$0xff] %v1136
        %1649 = vst [vmem:[%s196 + $0xc88] sm:$0xff] %v1137
        %1650 = vst [vmem:[%s196 + $0xc90] sm:$0xff] %v1138
        %1651 = vst [vmem:[%s196 + $0xc98] sm:$0xff] %v1139
        %1652 = vst [vmem:[%s196 + $0xca0] sm:$0xff] %v1140
        %1653 = vst [vmem:[%s196 + $0xca8] sm:$0xff] %v1141
        %1654 = vst [vmem:[%s196 + $0xcb0] sm:$0xff] %v1142
        %1655 = vst [vmem:[%s196 + $0xcb8] sm:$0xff] %v1143
        %1656 = vst [vmem:[%s196 + $0xcc0] sm:$0xff] %v1144
        %1657 = vst [vmem:[%s196 + $0xcc8] sm:$0xff] %v1145
        %1658 = vst [vmem:[%s196 + $0xcd0] sm:$0xff] %v1146
        %1659 = vst [vmem:[%s196 + $0xcd8] sm:$0xff] %v1147
        %1660 = vst [vmem:[%s196 + $0xce0] sm:$0xff] %v1148
        %1661 = vst [vmem:[%s196 + $0xce8] sm:$0xff] %v1149
        %1662 = vst [vmem:[%s196 + $0xcf0] sm:$0xff] %v1150
        %1663 = vst [vmem:[%s196 + $0xcf8] sm:$0xff] %v1151
        %1664 = vst [vmem:[%s196 + $0xd00] sm:$0xff] %v1152
        %1665 = vst [vmem:[%s196 + $0xd08] sm:$0xff] %v1153
        %1666 = vst [vmem:[%s196 + $0xd10] sm:$0xff] %v1154
        %1667 = vst [vmem:[%s196 + $0xd18] sm:$0xff] %v1155
        %1668 = vst [vmem:[%s196 + $0xd20] sm:$0xff] %v1156
        %1669 = vst [vmem:[%s196 + $0xd28] sm:$0xff] %v1157
        %1670 = vst [vmem:[%s196 + $0xd30] sm:$0xff] %v1158
        %1671 = vst [vmem:[%s196 + $0xd38] sm:$0xff] %v1159
        %1672 = vst [vmem:[%s196 + $0xd40] sm:$0xff] %v1160
        %1673 = vst [vmem:[%s196 + $0xd48] sm:$0xff] %v1161
        %1674 = vst [vmem:[%s196 + $0xd50] sm:$0xff] %v1162
        %1675 = vst [vmem:[%s196 + $0xd58] sm:$0xff] %v1163
        %1676 = vst [vmem:[%s196 + $0xd60] sm:$0xff] %v1164
        %1677 = vst [vmem:[%s196 + $0xd68] sm:$0xff] %v1165
        %1678 = vst [vmem:[%s196 + $0xd70] sm:$0xff] %v1166
        %1679 = vst [vmem:[%s196 + $0xd78] sm:$0xff] %v1167
        %1680 = vst [vmem:[%s196 + $0xd80] sm:$0xff] %v1168
        %1681 = vst [vmem:[%s196 + $0xd88] sm:$0xff] %v1169
        %1682 = vst [vmem:[%s196 + $0xd90] sm:$0xff] %v1170
        %1683 = vst [vmem:[%s196 + $0xd98] sm:$0xff] %v1171
        %1684 = vst [vmem:[%s196 + $0xda0] sm:$0xff] %v1172
        %1685 = vst [vmem:[%s196 + $0xda8] sm:$0xff] %v1173
        %1686 = vst [vmem:[%s196 + $0xdb0] sm:$0xff] %v1174
        %1687 = vst [vmem:[%s196 + $0xdb8] sm:$0xff] %v1175
        %1688 = vst [vmem:[%s196 + $0xdc0] sm:$0xff] %v1176
        %1689 = vst [vmem:[%s196 + $0xdc8] sm:$0xff] %v1177
        %1690 = vst [vmem:[%s196 + $0xdd0] sm:$0xff] %v1178
        %1691 = vst [vmem:[%s196 + $0xdd8] sm:$0xff] %v1179
        %1692 = vst [vmem:[%s196 + $0xde0] sm:$0xff] %v1180
        %1693 = vst [vmem:[%s196 + $0xde8] sm:$0xff] %v1181
        %1694 = vst [vmem:[%s196 + $0xdf0] sm:$0xff] %v1182
        %1695 = vst [vmem:[%s196 + $0xdf8] sm:$0xff] %v1183
        %1696 = vst [vmem:[%s196 + $0xe00] sm:$0xff] %v1184
        %1697 = vst [vmem:[%s196 + $0xe08] sm:$0xff] %v1185
        %1698 = vst [vmem:[%s196 + $0xe10] sm:$0xff] %v1186
        %1699 = vst [vmem:[%s196 + $0xe18] sm:$0xff] %v1187
        %1700 = vst [vmem:[%s196 + $0xe20] sm:$0xff] %v1188
        %1701 = vst [vmem:[%s196 + $0xe28] sm:$0xff] %v1189
        %1702 = vst [vmem:[%s196 + $0xe30] sm:$0xff] %v1190
        %1703 = vst [vmem:[%s196 + $0xe38] sm:$0xff] %v1191
        %1704 = vst [vmem:[%s196 + $0xe40] sm:$0xff] %v1192
        %1705 = vst [vmem:[%s196 + $0xe48] sm:$0xff] %v1193
        %1706 = vst [vmem:[%s196 + $0xe50] sm:$0xff] %v1194
        %1707 = vst [vmem:[%s196 + $0xe58] sm:$0xff] %v1195
        %1708 = vst [vmem:[%s196 + $0xe60] sm:$0xff] %v1196
        %1709 = vst [vmem:[%s196 + $0xe68] sm:$0xff] %v1197
        %1710 = vst [vmem:[%s196 + $0xe70] sm:$0xff] %v1198
        %1711 = vst [vmem:[%s196 + $0xe78] sm:$0xff] %v1199
        %1712 = vst [vmem:[%s196 + $0xe80] sm:$0xff] %v1200
        %1713 = vst [vmem:[%s196 + $0xe88] sm:$0xff] %v1201
        %1714 = vst [vmem:[%s196 + $0xe90] sm:$0xff] %v1202
        %1715 = vst [vmem:[%s196 + $0xe98] sm:$0xff] %v1203
        %1716 = vst [vmem:[%s196 + $0xea0] sm:$0xff] %v1204
        %1717 = vst [vmem:[%s196 + $0xea8] sm:$0xff] %v1205
        %1718 = vst [vmem:[%s196 + $0xeb0] sm:$0xff] %v1206
        %1719 = vst [vmem:[%s196 + $0xeb8] sm:$0xff] %v1207
        %1720 = vst [vmem:[%s196 + $0xec0] sm:$0xff] %v1208
        %1721 = vst [vmem:[%s196 + $0xec8] sm:$0xff] %v1209
        %1722 = vst [vmem:[%s196 + $0xed0] sm:$0xff] %v1210
        %1723 = vst [vmem:[%s196 + $0xed8] sm:$0xff] %v1211
        %1724 = vst [vmem:[%s196 + $0xee0] sm:$0xff] %v1212
        %1725 = vst [vmem:[%s196 + $0xee8] sm:$0xff] %v1213
        %1726 = vst [vmem:[%s196 + $0xef0] sm:$0xff] %v1214
        %1727 = vst [vmem:[%s196 + $0xef8] sm:$0xff] %v1215
        %1728 = vst [vmem:[%s196 + $0xf00] sm:$0xff] %v1216
        %1729 = vst [vmem:[%s196 + $0xf08] sm:$0xff] %v1217
        %1730 = vst [vmem:[%s196 + $0xf10] sm:$0xff] %v1218
        %1731 = vst [vmem:[%s196 + $0xf18] sm:$0xff] %v1219
        %1732 = vst [vmem:[%s196 + $0xf20] sm:$0xff] %v1220
        %1733 = vst [vmem:[%s196 + $0xf28] sm:$0xff] %v1221
        %1734 = vst [vmem:[%s196 + $0xf30] sm:$0xff] %v1222
        %1735 = vst [vmem:[%s196 + $0xf38] sm:$0xff] %v1223
        %1736 = vst [vmem:[%s196 + $0xf40] sm:$0xff] %v1224
        %1737 = vst [vmem:[%s196 + $0xf48] sm:$0xff] %v1225
        %1738 = vst [vmem:[%s196 + $0xf50] sm:$0xff] %v1226
        %1739 = vst [vmem:[%s196 + $0xf58] sm:$0xff] %v1227
        %1740 = vst [vmem:[%s196 + $0xf60] sm:$0xff] %v1228
        %1741 = vst [vmem:[%s196 + $0xf68] sm:$0xff] %v1229
        %1742 = vst [vmem:[%s196 + $0xf70] sm:$0xff] %v1230
        %1743 = vst [vmem:[%s196 + $0xf78] sm:$0xff] %v1231
        %1744 = vst [vmem:[%s196 + $0xf80] sm:$0xff] %v1232
        %1745 = vst [vmem:[%s196 + $0xf88] sm:$0xff] %v1233
        %1746 = vst [vmem:[%s196 + $0xf90] sm:$0xff] %v1234
        %1747 = vst [vmem:[%s196 + $0xf98] sm:$0xff] %v1235
        %1748 = vst [vmem:[%s196 + $0xfa0] sm:$0xff] %v1236
        %1749 = vst [vmem:[%s196 + $0xfa8] sm:$0xff] %v1237
        %1750 = vst [vmem:[%s196 + $0xfb0] sm:$0xff] %v1238
        %1751 = vst [vmem:[%s196 + $0xfb8] sm:$0xff] %v1239
        %1752 = vst [vmem:[%s196 + $0xfc0] sm:$0xff] %v1240
        %1753 = vst [vmem:[%s196 + $0xfc8] sm:$0xff] %v1241
        %1754 = vst [vmem:[%s196 + $0xfd0] sm:$0xff] %v1242
        %1755 = vst [vmem:[%s196 + $0xfd8] sm:$0xff] %v1243
        %1756 = vst [vmem:[%s196 + $0xfe0] sm:$0xff] %v1244
        %1757 = vst [vmem:[%s196 + $0xfe8] sm:$0xff] %v1245
        %1758 = vst [vmem:[%s196 + $0xff0] sm:$0xff] %v1246
        %1759 = vst [vmem:[%s196 + $0xff8] sm:$0xff] %v1247
        %s1760 = sand.u32 %s95, 1
        %s1761 = scalar_lea.sflag [#allocation4], %s1760
        %s1762 = sand.u32 %s95, 1
        %s1763 = smul.addr %s1762, 4096
        %s1764 = scalar_lea.vmem [#allocation5], %s1763
        // Predicated region
        $region33: #{tpu_custom_call.1} parent=27 // pred_check
          %p1765 = pneg %p105
        $region34: #{tpu_custom_call.1} parent=27 // pred_check_branch
          %1767 = sbr.rel (%p1765) target = $region36
        $region35: #{tpu_custom_call.1} parent=27 // pred_region
          %s1768 = smul.u32 1024, %s24
          %s1769 = ssub.s32 2352, %s1768
          %p1770 = scmp.lt.s32.totalorder %s1769, 1024
          %s1771 = scalar_select %p1770, %s1769, 1024
          %s1772 = smul.u32 64, %s1771
          %s1774 = ssub.s32 65536, %s1772
          %1775 = vsyncadd %s1761, %s1774
          %p1776 = scmp.ne.s32.totalorder 0, %s1772
          %s1777 = smul.addr %s23, 2352
          %s1778 = sadd.s32 %s1768, %s1777
          %s1779 = smul.addr %s1778, 64
          %s1780 = scalar_lea.hbm %s2, %s1779
          %s1781 = smul.u32 %s1771, 4
          %s1782 = sshll.u32 %s1781, 4
          %s1783 = sshll.u32 %s1764, 4
          %s1784 = int_to_ptr.vmem [resolvable:$true] %s1783
          %1786 = dma.vmem_to_hbm [thread:$0]  (%p1776), %s1784, %s1782, %s1780, %s1761
        $region36: #{tpu_custom_call.1} parent=27 // pred_fallthru
          _
      $region28: #{tpu_custom_call.1} parent=5 // pred_fallthru
        _
      %p1787 = scmp.le.s32.totalorder 2, %s14
      // Predicated region
      $region37: #{tpu_custom_call.1} parent=5 // pred_check
        %p1788 = pneg %p1787
      $region38: #{tpu_custom_call.1} parent=5 // pred_check_branch
        %1790 = sbr.rel (%p1788) target = $region40
      $region39: #{tpu_custom_call.1} parent=5 // pred_region
        %s1791 = ssub.s32 %s14, 2
        // Predicated region
        $region41: #{tpu_custom_call.1} parent=39 // pred_check
          %p1792 = pneg %p111
        $region42: #{tpu_custom_call.1} parent=39 // pred_check_branch
          %1794 = sbr.rel (%p1792) target = $region44
        $region43: #{tpu_custom_call.1} parent=39 // pred_region
          %s1795 = sand.u32 %s96, 1
          %s1796 = scalar_lea.sflag [#allocation4], %s1795
          %s1797 = sand.u32 %s96, 1
          %s1798 = smul.addr %s1797, 4096
          %s1799 = scalar_lea.vmem [#allocation5], %s1798
          %1800 = dma.done %s1796, 65536
        $region44: #{tpu_custom_call.1} parent=39 // pred_fallthru
          _
      $region40: #{tpu_custom_call.1} parent=5 // pred_fallthru
        _
    $region6: #{tpu_custom_call.1} parent=1 // loop_footer
      %s18 = sadd.s32 1, %s14
    $region7: #{tpu_custom_call.1} parent=1 // loop_footer_branch
      %13 = sbr.rel target = $region3
    $region8: #{tpu_custom_call.1} parent=1 // loop_exit
      _
    %1801 = vsyncpa [#allocation3], 1
    %s1802 = scalar_lea.sflag [#allocation3], 1
    %1803 = vsyncpa %s1802, 1
    %1804 = vsyncpa [#allocation4], 1
    %s1805 = scalar_lea.sflag [#allocation4], 1
    %1806 = vsyncpa %s1805, 1

</llo_original>
